<compile_context>
chip_gen: v7x
topology: tpu7x:2x2x1
jax: 0.10.0
libtpu: 0.0.40
codegen_flags: <defaults>
</compile_context>

<pallas_src>
import math

import jax
import jax.numpy as jnp
from jax import lax
from jax.experimental import pallas as pl
from jax.experimental.pallas import tpu as pltpu

# -------------------- config (small, consistent with the module) --------------------
B, S, H = 2, 8, 32            # batch, seq, hidden_size
N_HEADS = 4                   # n_heads
D_HEAD = H // N_HEADS
D_FF = 4 * H                  # intermediate_size (= 128, exactly one lane tile)
P_DROPOUT = 0.0               # dropout -> identity
LN_EPS = 1e-6                 # BERT-pytorch LayerNorm eps
ROWS = B * S                  # batch folded into sublane rows
LANES = 128

# -------------------- packed parameter slab layout (f32, (SLAB_ROWS, 128)) ----------
ROW_WQKV = 0      # rows  0..31 : lanes 0..95  = fused QKV weight (LN1 + scale folded)
                  #               lanes 96..127 = wo (head-major rows: wo[h*D_HEAD + d, :])
ROW_W1 = 32       # rows 32..63 : w1 (LN2 folded), lane-dense (D_FF == 128)
ROW_W2T = 64      # rows 64..95 : w2^T, lane-dense
ROW_BQKV = 96     # row 96      : lanes 0..95 = fused QKV bias, lanes 96..127 = bo
ROW_B1 = 104      # row 104     : b1 (LN2 folded), lane-dense
ROW_B2 = 112      # row 112     : lanes 0..31 = b2
SLAB_ROWS = 120   # multiple of 8 sublanes


# -------------------- shared math helpers --------------------
def _gelu(x):
    # BERT-pytorch GELU (tanh approximation)
    return 0.5 * x * (1.0 + jnp.tanh(math.sqrt(2.0 / math.pi) * (x + 0.044715 * x ** 3)))


def _layernorm_ref(x, gamma, beta):
    # BERT-pytorch LayerNorm: unbiased std, eps added to std (not variance).
    mean = jnp.mean(x, axis=-1, keepdims=True)
    var = jnp.sum((x - mean) ** 2, axis=-1, keepdims=True) / (x.shape[-1] - 1)
    std = jnp.sqrt(var)
    return gamma * (x - mean) / (std + LN_EPS) + beta


# -------------------- Pallas kernel: whole problem in one invocation ----------------
def transformer_block_kernel(x_ref, mask_ref, p_ref, o_ref):
    x = x_ref[...]            # (ROWS, H) = (16, 32)
    mask_add = mask_ref[...]  # (ROWS, ROWS) additive mask, block-diagonal over batches

    def ln(v):
        # No-affine LayerNorm (gamma/beta folded into the following matmul in the wrapper).
        mean = jnp.mean(v, axis=-1, keepdims=True)
        c = v - mean
        var = jnp.sum(c * c, axis=-1, keepdims=True) * (1.0 / (H - 1))
        return c * lax.rsqrt(var + LN_EPS)    # single EUP rsqrt (eps-on-variance placement)

    # ---- input sublayer: x + MultiHeadedAttention(LayerNorm(x)) ----
    xn = ln(x)
    w_qkv = p_ref[ROW_WQKV:ROW_WQKV + H, :]      # (32, 128) lane-dense (last 32 lanes = wo, ignored)
    b_row = p_ref[ROW_BQKV:ROW_BQKV + 1, :]      # (1, 128)  [ bqkv | bo ]
    qkv = jnp.dot(xn, w_qkv, preferred_element_type=jnp.float32) + b_row   # (16, 128)

    attn = jnp.zeros((ROWS, H), jnp.float32)
    for h in range(N_HEADS):                     # static unroll: 2-D ops only, no relayouts
        qh = qkv[:, h * D_HEAD:(h + 1) * D_HEAD]                      # (16, 8), scale pre-folded
        kh = qkv[:, H + h * D_HEAD:H + (h + 1) * D_HEAD]              # (16, 8)
        vh = qkv[:, 2 * H + h * D_HEAD:2 * H + (h + 1) * D_HEAD]      # (16, 8)
        s = jnp.einsum("qd,kd->qk", qh, kh,
                       preferred_element_type=jnp.float32) + mask_add  # (16, 16)
        s = s - jnp.max(s, axis=-1, keepdims=True)
        e = jnp.exp(s)
        p = e * pl.reciprocal(jnp.sum(e, axis=-1, keepdims=True), approx=True)  # EUP reciprocal
        ctx = jnp.dot(p, vh, preferred_element_type=jnp.float32)       # (16, 8)
        wo_h = p_ref[h * D_HEAD:(h + 1) * D_HEAD, 96:128]              # (8, 32): wo rows of head h
        attn = attn + jnp.dot(ctx, wo_h, preferred_element_type=jnp.float32)
    attn = attn + b_row[:, 96:128]               # + bo
    x1 = x + attn

    # ---- output sublayer: x1 + PositionwiseFeedForward(LayerNorm(x1)) ----
    xn2 = ln(x1)
    w1 = p_ref[ROW_W1:ROW_W1 + H, :]             # (32, 128)
    b1 = p_ref[ROW_B1:ROW_B1 + 1, :]             # (1, 128)
    hdn = _gelu(jnp.dot(xn2, w1, preferred_element_type=jnp.float32) + b1)   # (16, 128)
    w2t = p_ref[ROW_W2T:ROW_W2T + H, :]          # (32, 128) = w2^T
    ff = jnp.einsum("rk,nk->rn", hdn, w2t, preferred_element_type=jnp.float32)
    ff = ff + p_ref[ROW_B2:ROW_B2 + 1, 0:H]      # + b2

    # final self.dropout(x) is identity at p=0
    o_ref[...] = x1 + ff


# -------------------- wrapper-side parameter / mask packing --------------------
def _pack_params(params):
    (wq, bq, wk, bk, wv, bv, wo, bo, g1, be1, g2, be2, w1, b1, w2, b2) = params
    scale = 1.0 / math.sqrt(D_HEAD)

    # Fuse Q/K/V into a single (H, 3H) projection.
    wqkv = jnp.concatenate([wq, wk, wv], axis=1)     # (H, 3H)
    bqkv = jnp.concatenate([bq, bk, bv], axis=1)     # (1, 3H)

    # Fold LayerNorm affine params into the adjacent linear layers (exact):
    #   (g*xhat + b) @ W + c == xhat @ (diag(g) W) + (b @ W + c)
    wqkv_f = g1.reshape(H, 1) * wqkv
    bqkv_f = bqkv + be1 @ wqkv
    # Fold the 1/sqrt(d_head) score scale into the Q columns (weights AND bias).
    col_scale = jnp.concatenate(
        [jnp.full((1, H), scale, jnp.float32), jnp.ones((1, 2 * H), jnp.float32)], axis=1)
    wqkv_f = wqkv_f * col_scale
    bqkv_f = bqkv_f * col_scale

    w1_f = g2.reshape(H, 1) * w1
    b1_f = b1 + be2 @ w1

    slab = jnp.zeros((SLAB_ROWS, LANES), jnp.float32)
    slab = slab.at[ROW_WQKV:ROW_WQKV + H, 0:3 * H].set(wqkv_f)
    slab = slab.at[ROW_WQKV:ROW_WQKV + H, 96:128].set(wo)
    slab = slab.at[ROW_W1:ROW_W1 + H, :].set(w1_f)
    slab = slab.at[ROW_W2T:ROW_W2T + H, :].set(w2.T)
    slab = slab.at[ROW_BQKV, 0:3 * H].set(bqkv_f[0])
    slab = slab.at[ROW_BQKV, 96:128].set(bo[0])
    slab = slab.at[ROW_B1, :].set(b1_f[0])
    slab = slab.at[ROW_B2, 0:H].set(b2[0])
    return slab


def _make_mask_add(mask):
    # Block-diagonal additive mask over flattened (B*S, B*S) rows:
    #   0 where keep, -1e9 where masked or cross-batch (softmax drives those probs to 0).
    full = jnp.zeros((B * S, B * S), jnp.float32)
    for b in range(B):
        full = full.at[b * S:(b + 1) * S, b * S:(b + 1) * S].set(mask[b])
    return (full - 1.0) * 1e9


@jax.jit
def transformer_block(x, mask, params):
    x2d = x.reshape(B * S, H)
    mask_add = _make_mask_add(mask)
    slab = _pack_params(params)

    out2d = pl.pallas_call(
        transformer_block_kernel,
        out_shape=jax.ShapeDtypeStruct((B * S, H), jnp.float32),
        in_specs=[
            pl.BlockSpec(memory_space=pltpu.MemorySpace.VMEM),   # x (16, 32)
            pl.BlockSpec(memory_space=pltpu.MemorySpace.VMEM),   # additive mask (16, 16)
            pl.BlockSpec(memory_space=pltpu.MemorySpace.VMEM),   # packed params (120, 128)
        ],
        out_specs=pl.BlockSpec(memory_space=pltpu.MemorySpace.VMEM),
        # No grid: single invocation, everything resident in VMEM (~55 KB total).
        # TODO(synk): when scaled to real BERT dims (or v7x's 2 TCs), add a parallel grid axis
        # and tile with flash-style accumulators instead of keeping everything resident.
    )(x2d, mask_add, slab)

    return out2d.reshape(B, S, H)


# -------------------- pure-JAX reference (same math, exact divides) --------------------
def transformer_block_ref(x, mask, params):
    (wq, bq, wk, bk, wv, bv, wo, bo, g1, be1, g2, be2, w1, b1, w2, b2) = params

    xn = _layernorm_ref(x, g1[0], be1[0])
    q = xn @ wq + bq[0]
    k = xn @ wk + bk[0]
    v = xn @ wv + bv[0]

    def split(a):  # (B,S,H) -> (B,heads,S,d)
        return a.reshape(B, S, N_HEADS, D_HEAD).transpose(0, 2, 1, 3)

    qh, kh, vh = split(q), split(k), split(v)
    scores = jnp.einsum("bhqd,bhkd->bhqk", qh, kh) / math.sqrt(D_HEAD)
    scores = jnp.where(mask[:, None, :, :] == 0, -1e9, scores)
    p = jax.nn.softmax(scores, axis=-1)
    attn = jnp.einsum("bhqk,bhkd->bhqd", p, vh).transpose(0, 2, 1, 3).reshape(B, S, H)
    x1 = x + (attn @ wo + bo[0])

    xn2 = _layernorm_ref(x1, g2[0], be2[0])
    ff = _gelu(xn2 @ w1 + b1[0]) @ w2 + b2[0]
    return x1 + ff


# -------------------- deterministic parameter init --------------------
def make_params(key):
    def lin(k, fan_in, fan_out):
        bound = 1.0 / math.sqrt(fan_in)
        kw, kb = jax.random.split(k)
        w = jax.random.uniform(kw, (fan_in, fan_out), jnp.float32, -bound, bound)
        b = jax.random.uniform(kb, (1, fan_out), jnp.float32, -bound, bound)
        return w, b

    ks = jax.random.split(key, 6)
    wq, bq = lin(ks[0], H, H)
    wk, bk = lin(ks[1], H, H)
    wv, bv = lin(ks[2], H, H)
    wo, bo = lin(ks[3], H, H)
    w1, b1 = lin(ks[4], H, D_FF)
    w2, b2 = lin(ks[5], D_FF, H)
    g1 = jnp.ones((1, H), jnp.float32)
    be1 = jnp.zeros((1, H), jnp.float32)
    g2 = jnp.ones((1, H), jnp.float32)
    be2 = jnp.zeros((1, H), jnp.float32)
    return (wq, bq, wk, bk, wv, bv, wo, bo, g1, be1, g2, be2, w1, b1, w2, b2)


if __name__ == "__main__":
    key = jax.random.PRNGKey(0)
    kx, kp = jax.random.split(key)

    x = jax.random.normal(kx, (B, S, H), jnp.float32)
    mask = jnp.ones((B, S, S), jnp.float32)
    mask = mask.at[1, :, S - 2:].set(0.0)   # mask out last 2 key positions in batch 1
    params = make_params(kp)

    out = transformer_block(x, mask, params)
    out = jax.block_until_ready(out)

    ref = transformer_block_ref(x, mask, params)
    assert out.shape == (B, S, H)
    # Tolerance absorbs pl.reciprocal(approx=True) in softmax and the eps-on-variance
    # placement in the kernel LayerNorm (both << 5e-3).
    assert jnp.allclose(out, ref, rtol=5e-3, atol=5e-3), "Pallas output mismatch vs reference"

    print("KERNEL_OK")
</pallas_src>

<mosaic_0001>
module attributes {stable_mosaic.version = 11 : i64} {
  func.func @transformer_block_kernel(%arg0: memref<16x32xf32, #tpu.memory_space<vmem>>, %arg1: memref<16x16xf32, #tpu.memory_space<vmem>>, %arg2: memref<120x128xf32, #tpu.memory_space<vmem>>, %arg3: memref<16x32xf32, #tpu.memory_space<vmem>>) attributes {dimension_semantics = [], scalar_prefetch = 0 : i64, scratch_operands = 0 : i64, tpu.core_type = #tpu.core_type<tc>} {
    %c0 = arith.constant 0 : index
    %c0_0 = arith.constant 0 : index
    %0 = vector.load %arg0[%c0, %c0_0] : memref<16x32xf32, #tpu.memory_space<vmem>>, vector<16x32xf32>
    %c0_1 = arith.constant 0 : index
    %c0_2 = arith.constant 0 : index
    %1 = vector.load %arg1[%c0_1, %c0_2] : memref<16x16xf32, #tpu.memory_space<vmem>>, vector<16x16xf32>
    %cst = arith.constant dense<0.000000e+00> : vector<16xf32>
    %2 = vector.multi_reduction <add>, %0, %cst [1] : vector<16x32xf32> to vector<16xf32>
    %3 = vector.shape_cast %2 : vector<16xf32> to vector<16x1xf32>
    %cst_3 = arith.constant 3.200000e+01 : f32
    %4 = vector.broadcast %cst_3 : f32 to vector<16x1xf32>
    %5 = arith.divf %3, %4 : vector<16x1xf32>
    %6 = vector.broadcast %5 : vector<16x1xf32> to vector<16x32xf32>
    %7 = arith.subf %0, %6 : vector<16x32xf32>
    %8 = arith.mulf %7, %7 : vector<16x32xf32>
    %cst_4 = arith.constant dense<0.000000e+00> : vector<16xf32>
    %9 = vector.multi_reduction <add>, %8, %cst_4 [1] : vector<16x32xf32> to vector<16xf32>
    %10 = vector.shape_cast %9 : vector<16xf32> to vector<16x1xf32>
    %cst_5 = arith.constant 0.0322580636 : f32
    %11 = vector.broadcast %cst_5 : f32 to vector<16x1xf32>
    %12 = arith.mulf %10, %11 : vector<16x1xf32>
    %cst_6 = arith.constant 9.99999997E-7 : f32
    %13 = vector.broadcast %cst_6 : f32 to vector<16x1xf32>
    %14 = arith.addf %12, %13 : vector<16x1xf32>
    %15 = math.rsqrt %14 : vector<16x1xf32>
    %16 = vector.broadcast %15 : vector<16x1xf32> to vector<16x32xf32>
    %17 = arith.mulf %7, %16 : vector<16x32xf32>
    %c0_7 = arith.constant 0 : index
    %c0_8 = arith.constant 0 : index
    %18 = vector.load %arg2[%c0_7, %c0_8] : memref<120x128xf32, #tpu.memory_space<vmem>>, vector<32x128xf32>
    %c96 = arith.constant 96 : index
    %c0_9 = arith.constant 0 : index
    %19 = vector.load %arg2[%c96, %c0_9] : memref<120x128xf32, #tpu.memory_space<vmem>>, vector<1x128xf32>
    %cst_10 = arith.constant dense<0.000000e+00> : vector<16x128xf32>
    %20 = tpu.matmul %17, %18, %cst_10 {dimension_numbers = #tpu.dot_dimension_numbers<[1], [0], [0], [1], [0, 0, 1, 1], [], []>} : vector<16x32xf32>, vector<32x128xf32>, vector<16x128xf32> -> vector<16x128xf32>
    %21 = vector.broadcast %19 : vector<1x128xf32> to vector<16x128xf32>
    %22 = arith.addf %20, %21 : vector<16x128xf32>
    %cst_11 = arith.constant 0.000000e+00 : f32
    %23 = vector.broadcast %cst_11 : f32 to vector<16x32xf32>
    %24 = vector.extract_strided_slice %22 {offsets = [0, 0], sizes = [16, 8], strides = [1, 1]} : vector<16x128xf32> to vector<16x8xf32>
    %25 = vector.extract_strided_slice %22 {offsets = [0, 32], sizes = [16, 8], strides = [1, 1]} : vector<16x128xf32> to vector<16x8xf32>
    %26 = vector.extract_strided_slice %22 {offsets = [0, 64], sizes = [16, 8], strides = [1, 1]} : vector<16x128xf32> to vector<16x8xf32>
    "tpu.trace_start"() <{level = 10 : i32, message = "qd,kd->qk"}> : () -> ()
    %cst_12 = arith.constant dense<0.000000e+00> : vector<16x16xf32>
    %27 = tpu.matmul %24, %25, %cst_12 {dimension_numbers = #tpu.dot_dimension_numbers<[1], [1], [0], [0], [0, 0, 1, 0], [], []>} : vector<16x8xf32>, vector<16x8xf32>, vector<16x16xf32> -> vector<16x16xf32>
    "tpu.trace_stop"() : () -> ()
    %28 = arith.addf %27, %1 : vector<16x16xf32>
    %cst_13 = arith.constant dense<0xFF800000> : vector<16xf32>
    %29 = vector.multi_reduction <maximumf>, %28, %cst_13 [1] : vector<16x16xf32> to vector<16xf32>
    %30 = vector.shape_cast %29 : vector<16xf32> to vector<16x1xf32>
    %31 = vector.broadcast %30 : vector<16x1xf32> to vector<16x16xf32>
    %32 = arith.subf %28, %31 : vector<16x16xf32>
    %33 = math.exp %32 : vector<16x16xf32>
    %cst_14 = arith.constant dense<0.000000e+00> : vector<16xf32>
    %34 = vector.multi_reduction <add>, %33, %cst_14 [1] : vector<16x16xf32> to vector<16xf32>
    %35 = vector.shape_cast %34 : vector<16xf32> to vector<16x1xf32>
    %36 = tpu.reciprocal %35 {approx = true} : vector<16x1xf32> -> vector<16x1xf32>
    %37 = vector.broadcast %36 : vector<16x1xf32> to vector<16x16xf32>
    %38 = arith.mulf %33, %37 : vector<16x16xf32>
    %cst_15 = arith.constant dense<0.000000e+00> : vector<16x8xf32>
    %39 = tpu.matmul %38, %26, %cst_15 {dimension_numbers = #tpu.dot_dimension_numbers<[1], [0], [0], [1], [0, 0, 1, 1], [], []>} : vector<16x16xf32>, vector<16x8xf32>, vector<16x8xf32> -> vector<16x8xf32>
    %c0_16 = arith.constant 0 : index
    %c96_17 = arith.constant 96 : index
    %40 = vector.load %arg2[%c0_16, %c96_17] : memref<120x128xf32, #tpu.memory_space<vmem>>, vector<8x32xf32>
    %cst_18 = arith.constant dense<0.000000e+00> : vector<16x32xf32>
    %41 = tpu.matmul %39, %40, %cst_18 {dimension_numbers = #tpu.dot_dimension_numbers<[1], [0], [0], [1], [0, 0, 1, 1], [], []>} : vector<16x8xf32>, vector<8x32xf32>, vector<16x32xf32> -> vector<16x32xf32>
    %42 = arith.addf %23, %41 : vector<16x32xf32>
    %43 = vector.extract_strided_slice %22 {offsets = [0, 8], sizes = [16, 8], strides = [1, 1]} : vector<16x128xf32> to vector<16x8xf32>
    %44 = vector.extract_strided_slice %22 {offsets = [0, 40], sizes = [16, 8], strides = [1, 1]} : vector<16x128xf32> to vector<16x8xf32>
    %45 = vector.extract_strided_slice %22 {offsets = [0, 72], sizes = [16, 8], strides = [1, 1]} : vector<16x128xf32> to vector<16x8xf32>
    "tpu.trace_start"() <{level = 10 : i32, message = "qd,kd->qk"}> : () -> ()
    %cst_19 = arith.constant dense<0.000000e+00> : vector<16x16xf32>
    %46 = tpu.matmul %43, %44, %cst_19 {dimension_numbers = #tpu.dot_dimension_numbers<[1], [1], [0], [0], [0, 0, 1, 0], [], []>} : vector<16x8xf32>, vector<16x8xf32>, vector<16x16xf32> -> vector<16x16xf32>
    "tpu.trace_stop"() : () -> ()
    %47 = arith.addf %46, %1 : vector<16x16xf32>
    %cst_20 = arith.constant dense<0xFF800000> : vector<16xf32>
    %48 = vector.multi_reduction <maximumf>, %47, %cst_20 [1] : vector<16x16xf32> to vector<16xf32>
    %49 = vector.shape_cast %48 : vector<16xf32> to vector<16x1xf32>
    %50 = vector.broadcast %49 : vector<16x1xf32> to vector<16x16xf32>
    %51 = arith.subf %47, %50 : vector<16x16xf32>
    %52 = math.exp %51 : vector<16x16xf32>
    %cst_21 = arith.constant dense<0.000000e+00> : vector<16xf32>
    %53 = vector.multi_reduction <add>, %52, %cst_21 [1] : vector<16x16xf32> to vector<16xf32>
    %54 = vector.shape_cast %53 : vector<16xf32> to vector<16x1xf32>
    %55 = tpu.reciprocal %54 {approx = true} : vector<16x1xf32> -> vector<16x1xf32>
    %56 = vector.broadcast %55 : vector<16x1xf32> to vector<16x16xf32>
    %57 = arith.mulf %52, %56 : vector<16x16xf32>
    %cst_22 = arith.constant dense<0.000000e+00> : vector<16x8xf32>
    %58 = tpu.matmul %57, %45, %cst_22 {dimension_numbers = #tpu.dot_dimension_numbers<[1], [0], [0], [1], [0, 0, 1, 1], [], []>} : vector<16x16xf32>, vector<16x8xf32>, vector<16x8xf32> -> vector<16x8xf32>
    %c8 = arith.constant 8 : index
    %c96_23 = arith.constant 96 : index
    %59 = vector.load %arg2[%c8, %c96_23] : memref<120x128xf32, #tpu.memory_space<vmem>>, vector<8x32xf32>
    %cst_24 = arith.constant dense<0.000000e+00> : vector<16x32xf32>
    %60 = tpu.matmul %58, %59, %cst_24 {dimension_numbers = #tpu.dot_dimension_numbers<[1], [0], [0], [1], [0, 0, 1, 1], [], []>} : vector<16x8xf32>, vector<8x32xf32>, vector<16x32xf32> -> vector<16x32xf32>
    %61 = arith.addf %42, %60 : vector<16x32xf32>
    %62 = vector.extract_strided_slice %22 {offsets = [0, 16], sizes = [16, 8], strides = [1, 1]} : vector<16x128xf32> to vector<16x8xf32>
    %63 = vector.extract_strided_slice %22 {offsets = [0, 48], sizes = [16, 8], strides = [1, 1]} : vector<16x128xf32> to vector<16x8xf32>
    %64 = vector.extract_strided_slice %22 {offsets = [0, 80], sizes = [16, 8], strides = [1, 1]} : vector<16x128xf32> to vector<16x8xf32>
    "tpu.trace_start"() <{level = 10 : i32, message = "qd,kd->qk"}> : () -> ()
    %cst_25 = arith.constant dense<0.000000e+00> : vector<16x16xf32>
    %65 = tpu.matmul %62, %63, %cst_25 {dimension_numbers = #tpu.dot_dimension_numbers<[1], [1], [0], [0], [0, 0, 1, 0], [], []>} : vector<16x8xf32>, vector<16x8xf32>, vector<16x16xf32> -> vector<16x16xf32>
    "tpu.trace_stop"() : () -> ()
    %66 = arith.addf %65, %1 : vector<16x16xf32>
    %cst_26 = arith.constant dense<0xFF800000> : vector<16xf32>
    %67 = vector.multi_reduction <maximumf>, %66, %cst_26 [1] : vector<16x16xf32> to vector<16xf32>
    %68 = vector.shape_cast %67 : vector<16xf32> to vector<16x1xf32>
    %69 = vector.broadcast %68 : vector<16x1xf32> to vector<16x16xf32>
    %70 = arith.subf %66, %69 : vector<16x16xf32>
    %71 = math.exp %70 : vector<16x16xf32>
    %cst_27 = arith.constant dense<0.000000e+00> : vector<16xf32>
    %72 = vector.multi_reduction <add>, %71, %cst_27 [1] : vector<16x16xf32> to vector<16xf32>
    %73 = vector.shape_cast %72 : vector<16xf32> to vector<16x1xf32>
    %74 = tpu.reciprocal %73 {approx = true} : vector<16x1xf32> -> vector<16x1xf32>
    %75 = vector.broadcast %74 : vector<16x1xf32> to vector<16x16xf32>
    %76 = arith.mulf %71, %75 : vector<16x16xf32>
    %cst_28 = arith.constant dense<0.000000e+00> : vector<16x8xf32>
    %77 = tpu.matmul %76, %64, %cst_28 {dimension_numbers = #tpu.dot_dimension_numbers<[1], [0], [0], [1], [0, 0, 1, 1], [], []>} : vector<16x16xf32>, vector<16x8xf32>, vector<16x8xf32> -> vector<16x8xf32>
    %c16 = arith.constant 16 : index
    %c96_29 = arith.constant 96 : index
    %78 = vector.load %arg2[%c16, %c96_29] : memref<120x128xf32, #tpu.memory_space<vmem>>, vector<8x32xf32>
    %cst_30 = arith.constant dense<0.000000e+00> : vector<16x32xf32>
    %79 = tpu.matmul %77, %78, %cst_30 {dimension_numbers = #tpu.dot_dimension_numbers<[1], [0], [0], [1], [0, 0, 1, 1], [], []>} : vector<16x8xf32>, vector<8x32xf32>, vector<16x32xf32> -> vector<16x32xf32>
    %80 = arith.addf %61, %79 : vector<16x32xf32>
    %81 = vector.extract_strided_slice %22 {offsets = [0, 24], sizes = [16, 8], strides = [1, 1]} : vector<16x128xf32> to vector<16x8xf32>
    %82 = vector.extract_strided_slice %22 {offsets = [0, 56], sizes = [16, 8], strides = [1, 1]} : vector<16x128xf32> to vector<16x8xf32>
    %83 = vector.extract_strided_slice %22 {offsets = [0, 88], sizes = [16, 8], strides = [1, 1]} : vector<16x128xf32> to vector<16x8xf32>
    "tpu.trace_start"() <{level = 10 : i32, message = "qd,kd->qk"}> : () -> ()
    %cst_31 = arith.constant dense<0.000000e+00> : vector<16x16xf32>
    %84 = tpu.matmul %81, %82, %cst_31 {dimension_numbers = #tpu.dot_dimension_numbers<[1], [1], [0], [0], [0, 0, 1, 0], [], []>} : vector<16x8xf32>, vector<16x8xf32>, vector<16x16xf32> -> vector<16x16xf32>
    "tpu.trace_stop"() : () -> ()
    %85 = arith.addf %84, %1 : vector<16x16xf32>
    %cst_32 = arith.constant dense<0xFF800000> : vector<16xf32>
    %86 = vector.multi_reduction <maximumf>, %85, %cst_32 [1] : vector<16x16xf32> to vector<16xf32>
    %87 = vector.shape_cast %86 : vector<16xf32> to vector<16x1xf32>
    %88 = vector.broadcast %87 : vector<16x1xf32> to vector<16x16xf32>
    %89 = arith.subf %85, %88 : vector<16x16xf32>
    %90 = math.exp %89 : vector<16x16xf32>
    %cst_33 = arith.constant dense<0.000000e+00> : vector<16xf32>
    %91 = vector.multi_reduction <add>, %90, %cst_33 [1] : vector<16x16xf32> to vector<16xf32>
    %92 = vector.shape_cast %91 : vector<16xf32> to vector<16x1xf32>
    %93 = tpu.reciprocal %92 {approx = true} : vector<16x1xf32> -> vector<16x1xf32>
    %94 = vector.broadcast %93 : vector<16x1xf32> to vector<16x16xf32>
    %95 = arith.mulf %90, %94 : vector<16x16xf32>
    %cst_34 = arith.constant dense<0.000000e+00> : vector<16x8xf32>
    %96 = tpu.matmul %95, %83, %cst_34 {dimension_numbers = #tpu.dot_dimension_numbers<[1], [0], [0], [1], [0, 0, 1, 1], [], []>} : vector<16x16xf32>, vector<16x8xf32>, vector<16x8xf32> -> vector<16x8xf32>
    %c24 = arith.constant 24 : index
    %c96_35 = arith.constant 96 : index
    %97 = vector.load %arg2[%c24, %c96_35] : memref<120x128xf32, #tpu.memory_space<vmem>>, vector<8x32xf32>
    %cst_36 = arith.constant dense<0.000000e+00> : vector<16x32xf32>
    %98 = tpu.matmul %96, %97, %cst_36 {dimension_numbers = #tpu.dot_dimension_numbers<[1], [0], [0], [1], [0, 0, 1, 1], [], []>} : vector<16x8xf32>, vector<8x32xf32>, vector<16x32xf32> -> vector<16x32xf32>
    %99 = arith.addf %80, %98 : vector<16x32xf32>
    %100 = vector.extract_strided_slice %19 {offsets = [0, 96], sizes = [1, 32], strides = [1, 1]} : vector<1x128xf32> to vector<1x32xf32>
    %101 = vector.broadcast %100 : vector<1x32xf32> to vector<16x32xf32>
    %102 = arith.addf %99, %101 : vector<16x32xf32>
    %103 = arith.addf %0, %102 : vector<16x32xf32>
    %cst_37 = arith.constant dense<0.000000e+00> : vector<16xf32>
    %104 = vector.multi_reduction <add>, %103, %cst_37 [1] : vector<16x32xf32> to vector<16xf32>
    %105 = vector.shape_cast %104 : vector<16xf32> to vector<16x1xf32>
    %cst_38 = arith.constant 3.200000e+01 : f32
    %106 = vector.broadcast %cst_38 : f32 to vector<16x1xf32>
    %107 = arith.divf %105, %106 : vector<16x1xf32>
    %108 = vector.broadcast %107 : vector<16x1xf32> to vector<16x32xf32>
    %109 = arith.subf %103, %108 : vector<16x32xf32>
    %110 = arith.mulf %109, %109 : vector<16x32xf32>
    %cst_39 = arith.constant dense<0.000000e+00> : vector<16xf32>
    %111 = vector.multi_reduction <add>, %110, %cst_39 [1] : vector<16x32xf32> to vector<16xf32>
    %112 = vector.shape_cast %111 : vector<16xf32> to vector<16x1xf32>
    %cst_40 = arith.constant 0.0322580636 : f32
    %113 = vector.broadcast %cst_40 : f32 to vector<16x1xf32>
    %114 = arith.mulf %112, %113 : vector<16x1xf32>
    %cst_41 = arith.constant 9.99999997E-7 : f32
    %115 = vector.broadcast %cst_41 : f32 to vector<16x1xf32>
    %116 = arith.addf %114, %115 : vector<16x1xf32>
    %117 = math.rsqrt %116 : vector<16x1xf32>
    %118 = vector.broadcast %117 : vector<16x1xf32> to vector<16x32xf32>
    %119 = arith.mulf %109, %118 : vector<16x32xf32>
    %c32 = arith.constant 32 : index
    %c0_42 = arith.constant 0 : index
    %120 = vector.load %arg2[%c32, %c0_42] : memref<120x128xf32, #tpu.memory_space<vmem>>, vector<32x128xf32>
    %c104 = arith.constant 104 : index
    %c0_43 = arith.constant 0 : index
    %121 = vector.load %arg2[%c104, %c0_43] : memref<120x128xf32, #tpu.memory_space<vmem>>, vector<1x128xf32>
    %cst_44 = arith.constant dense<0.000000e+00> : vector<16x128xf32>
    %122 = tpu.matmul %119, %120, %cst_44 {dimension_numbers = #tpu.dot_dimension_numbers<[1], [0], [0], [1], [0, 0, 1, 1], [], []>} : vector<16x32xf32>, vector<32x128xf32>, vector<16x128xf32> -> vector<16x128xf32>
    %123 = vector.broadcast %121 : vector<1x128xf32> to vector<16x128xf32>
    %124 = arith.addf %122, %123 : vector<16x128xf32>
    %cst_45 = arith.constant 5.000000e-01 : f32
    %125 = vector.broadcast %cst_45 : f32 to vector<16x128xf32>
    %126 = arith.mulf %125, %124 : vector<16x128xf32>
    %127 = arith.mulf %124, %124 : vector<16x128xf32>
    %128 = arith.mulf %124, %127 : vector<16x128xf32>
    %cst_46 = arith.constant 4.471500e-02 : f32
    %129 = vector.broadcast %cst_46 : f32 to vector<16x128xf32>
    %130 = arith.mulf %129, %128 : vector<16x128xf32>
    %131 = arith.addf %124, %130 : vector<16x128xf32>
    %cst_47 = arith.constant 0.797884583 : f32
    %132 = vector.broadcast %cst_47 : f32 to vector<16x128xf32>
    %133 = arith.mulf %132, %131 : vector<16x128xf32>
    %134 = math.tanh %133 : vector<16x128xf32>
    %cst_48 = arith.constant 1.000000e+00 : f32
    %135 = vector.broadcast %cst_48 : f32 to vector<16x128xf32>
    %136 = arith.addf %135, %134 : vector<16x128xf32>
    %137 = arith.mulf %126, %136 : vector<16x128xf32>
    %c64 = arith.constant 64 : index
    %c0_49 = arith.constant 0 : index
    %138 = vector.load %arg2[%c64, %c0_49] : memref<120x128xf32, #tpu.memory_space<vmem>>, vector<32x128xf32>
    "tpu.trace_start"() <{level = 10 : i32, message = "rk,nk->rn"}> : () -> ()
    %cst_50 = arith.constant dense<0.000000e+00> : vector<16x32xf32>
    %139 = tpu.matmul %137, %138, %cst_50 {dimension_numbers = #tpu.dot_dimension_numbers<[1], [1], [0], [0], [0, 0, 1, 0], [], []>} : vector<16x128xf32>, vector<32x128xf32>, vector<16x32xf32> -> vector<16x32xf32>
    "tpu.trace_stop"() : () -> ()
    %c112 = arith.constant 112 : index
    %c0_51 = arith.constant 0 : index
    %140 = vector.load %arg2[%c112, %c0_51] : memref<120x128xf32, #tpu.memory_space<vmem>>, vector<1x32xf32>
    %141 = vector.broadcast %140 : vector<1x32xf32> to vector<16x32xf32>
    %142 = arith.addf %139, %141 : vector<16x32xf32>
    %143 = arith.addf %103, %142 : vector<16x32xf32>
    %c0_52 = arith.constant 0 : index
    %c0_53 = arith.constant 0 : index
    %144 = vector.load %arg3[%c0_52, %c0_53] : memref<16x32xf32, #tpu.memory_space<vmem>>, vector<16x32xf32>
    tpu.vector_store %arg3[%c0_52, %c0_53], %143 {strides = array<i32>} : memref<16x32xf32, #tpu.memory_space<vmem>>, vector<16x32xf32>,
    return
  }
}

</mosaic_0001>

<llo_original>
// kernel: transformer_block.1
$region0: #{transformer_block.1}
  #allocation0 [shape = 'u32[]', space=smem, size = 0x4, offset = 0x4, fixed_abs, tag = 'smem constant byte address 0x4 - core index']
  #allocation1 [shape = 'u32[144,128]{1,0:T(1,128)}', space=vmem, size = 0x12000, scoped, tag = 'internal scratch']
  %s0 = inlined_call_operand.vmem [shape: f32[16,32], index: 0, kind: input, shape index: {}]
  %s1 = inlined_call_operand.vmem [shape: f32[16,16], index: 1, kind: input, shape index: {}]
  %s2 = inlined_call_operand.vmem [shape: f32[120,128], index: 2, kind: input, shape index: {}]
  %s3 = inlined_call_operand.hbm [shape: f32[16,32], index: 3, kind: output, shape index: {}]
  %s4 = sld [smem:[#allocation0]]
  $region22: #{transformer_block.1} parent=0
    _
  %s6 = ssub.s32 1, %s4
  %s7 = scalar_select 0, %s6, %s4
  $region1: #{transformer_block.1} parent=0
    #allocation2 [shape = 'u8[8192]{0}', space=vmem, size = 0x2000, scoped, tag = 'output window, operand 0, single buffered']
    #allocation3 [shape = 's32[1]{0}', space=sflag, size = 0x4, scoped, tag = 'scoped memory for transformer_block.1']
    %8 = vsyncpa [#allocation3], 0
    // Predicated region
    $region2: #{transformer_block.1} parent=1 // pred_check
      _
    $region3: #{transformer_block.1} parent=1 // pred_check_branch
      %10 = sbr.rel (0) target = $region5
    $region4: #{transformer_block.1} parent=1 // pred_region
      _
    $region5: #{transformer_block.1} parent=1 // pred_fallthru
      _
    // Predicated region
    $region6: #{transformer_block.1} parent=1 // pred_check
      _
    $region7: #{transformer_block.1} parent=1 // pred_check_branch
      %12 = sbr.rel (0) target = $region9
    $region8: #{transformer_block.1} parent=1 // pred_region
      _
    $region9: #{transformer_block.1} parent=1 // pred_fallthru
      _
    // Predicated region
    $region10: #{transformer_block.1} parent=1 // pred_check
      _
    $region11: #{transformer_block.1} parent=1 // pred_check_branch
      %14 = sbr.rel (0) target = $region13
    $region12: #{transformer_block.1} parent=1 // pred_region
      _
    $region13: #{transformer_block.1} parent=1 // pred_fallthru
      _
    %v15 = vld [vmem:[%s0] sm:$0xff]
    %v16 = vld [vmem:[%s0 + $0x8] sm:$0xff]
    %v17 = vld [vmem:[%s1] sm:$0xff]
    %v18 = vld [vmem:[%s1 + $0x8] sm:$0xff]
    %vm19 = vcmask 261120
    %v20 = vsel %vm19, %v15, 0.0
    %21 = vadd.xlane.f32.xlu0 %v20
    %v22 = vpop.xlane.xlu0 %21
    %v23 = vsel %vm19, %v16, 0.0
    %24 = vadd.xlane.f32.xlu0 %v23
    %v25 = vpop.xlane.xlu0 %24
    %v26 = vrcp.pop 32.0
    %v27 = vmul.f32 %v22, %v26
    %v28 = vmul.f32 %v25, %v26
    %v29 = vsub.f32 %v15, %v27
    %v30 = vsub.f32 %v16, %v28
    %v31 = vmul.f32 %v29, %v29
    %v32 = vmul.f32 %v30, %v30
    %v33 = vsel %vm19, %v31, 0.0
    %34 = vadd.xlane.f32.xlu0 %v33
    %v35 = vpop.xlane.xlu0 %34
    %v36 = vsel %vm19, %v32, 0.0
    %37 = vadd.xlane.f32.xlu0 %v36
    %v38 = vpop.xlane.xlu0 %37
    %v39 = vmul.f32 %v35, 0.032258064
    %v40 = vmul.f32 %v38, 0.032258064
    %v41 = vadd.f32 %v39, 1e-06
    %v42 = vadd.f32 %v40, 1e-06
    %v43 = vrsqrt.pop %v41
    %v44 = vrsqrt.pop %v42
    %v45 = vmul.f32 %v29, %v43
    %v46 = vmul.f32 %v30, %v44
    %v47 = vld [vmem:[%s2] sm:$0xff]
    %v48 = vld [vmem:[%s2 + $0x8] sm:$0xff]
    %v49 = vld [vmem:[%s2 + $0x10] sm:$0xff]
    %v50 = vld [vmem:[%s2 + $0x18] sm:$0xff]
    %v51 = vld [vmem:[%s2 + $0x60] sm:$0x1]
    %v52 = vlaneseq
    %v53 = vshrl.u32 %v52, 7
    %v54 = vsub.s32 0, %v53
    %v55 = vrot.slane %v51, %v54
    %v57 = vsel %vm19, %v45, 0
    %v60 = vsel %vm19, %v46, 0
    %62 = vmatprep.subr.mxu0 0.0
    %63 = vmatpush1.msra.mxu0 %v47
    %64 = vmatprep.subr.mxu0 0.0
    %65 = vmatpush1.msra.mxu0 %v48
    %66 = vmatprep.subr.mxu0 0.0
    %67 = vmatpush1.msra.mxu0 %v49
    %68 = vmatprep.subr.mxu0 0.0
    %69 = vmatpush1.msra.mxu0 %v50
    %70 = vmatprep.subr.mxu0 0.0
    %71 = vmatpush1.msra.mxu0 0.0
    %72 = vmatprep.subr.mxu0 0.0
    %73 = vmatpush1.msra.mxu0 0.0
    %74 = vmatprep.subr.mxu0 0.0
    %75 = vmatpush1.msra.mxu0 0.0
    %76 = vmatprep.subr.mxu0 0.0
    %77 = vmatpush1.msra.mxu0 0.0
    %78 = vmatprep.subr.mxu0 0.0
    %79 = vmatpush1.msra.mxu0 0.0
    %80 = vmatprep.subr.mxu0 0.0
    %81 = vmatpush1.msra.mxu0 0.0
    %82 = vmatprep.subr.mxu0 0.0
    %83 = vmatpush1.msra.mxu0 0.0
    %84 = vmatprep.subr.mxu0 0.0
    %85 = vmatpush1.msra.mxu0 0.0
    %86 = vmatprep.subr.mxu0 0.0
    %87 = vmatpush1.msra.mxu0 0.0
    %88 = vmatprep.subr.mxu0 0.0
    %89 = vmatpush1.msra.mxu0 0.0
    %90 = vmatprep.subr.mxu0 0.0
    %91 = vmatpush1.msra.mxu0 0.0
    %92 = vmatprep.subr.mxu0 0.0
    %93 = vmatpush1.msra.mxu0 0.0
    %94 = vmatprep.subr.mxu0 0.0
    %95 = vmatpush1.msra.mxu0 0.0
    %96 = vmatprep.subr.mxu0 0.0
    %97 = vmatpush1.msra.mxu0 0.0
    %98 = vmatprep.subr.mxu0 0.0
    %99 = vmatpush1.msra.mxu0 0.0
    %100 = vmatprep.subr.mxu0 0.0
    %101 = vmatpush1.msra.mxu0 0.0
    %102 = vmatprep.subr.mxu0 0.0
    %103 = vmatpush1.msra.mxu0 0.0
    %104 = vmatprep.subr.mxu0 0.0
    %105 = vmatpush1.msra.mxu0 0.0
    %106 = vmatprep.subr.mxu0 0.0
    %107 = vmatpush1.msra.mxu0 0.0
    %108 = vmatprep.subr.mxu0 0.0
    %109 = vmatpush1.msra.mxu0 0.0
    %110 = vmatprep.subr.mxu0 0.0
    %111 = vmatpush1.msra.mxu0 0.0
    %112 = vmatprep.subr.mxu0 0.0
    %113 = vmatpush1.msra.mxu0 0.0
    %114 = vmatprep.subr.mxu0 0.0
    %115 = vmatpush1.msra.mxu0 0.0
    %116 = vmatprep.subr.mxu0 0.0
    %117 = vmatpush1.msra.mxu0 0.0
    %118 = vmatprep.subr.mxu0 0.0
    %119 = vmatpush1.msra.mxu0 0.0
    %120 = vmatprep.subr.mxu0 0.0
    %121 = vmatpush1.msra.mxu0 0.0
    %122 = vmatprep.subr.mxu0 0.0
    %123 = vmatpush1.msra.mxu0 0.0
    %124 = vmatprep.subr.mxu0 0.0
    %125 = vmatpush1.msra.mxu0 0.0
    %126 = vmatprep.mubr.f32.mxu0 0.0
    %127 = vmatmul.mubr.f32.gmra.mrb[0].mxu0 %v57
    %v128 = vpop.f32.mrb[0].mxu0
    %v129 = vadd.f32 %v55, %v128
    %v130 = vpop.f32.mrb[0].mxu0
    %131 = vmatprep.mubr.f32.mxu0 0.0
    %132 = vmatmul.mubr.f32.gmra.mrb[0].mxu0 %v60
    %v133 = vpop.f32.mrb[0].mxu0
    %v134 = vadd.f32 %v55, %v133
    %v135 = vpop.f32.mrb[0].mxu0
    %136 = vdwg.mxu0
    %139 = vrot.lane.b32.xlu0 %v129, 96
    %v140 = vpop.permute.xlu0 %139
    %141 = vrot.lane.b32.xlu0 %v134, 96
    %v142 = vpop.permute.xlu0 %141
    %vm143 = vcmask 64512
    %v144 = vsel %vm143, %v129, 0
    %v146 = vsel %vm143, %v134, 0
    %v148 = vsel %vm143, %v140, 0
    %v150 = vsel %vm143, %v142, 0
    %152 = vmatprep.subr.mxu0 0.0
    %153 = vmatpush1.xpose.msra.mxu0 %v148
    %154 = vmatprep.subr.mxu0 0.0
    %155 = vmatpush1.xpose.msra.mxu0 %v150
    %156 = vmatprep.subr.mxu0 0.0
    %157 = vmatpush1.xpose.msra.mxu0 0.0
    %158 = vmatprep.subr.mxu0 0.0
    %159 = vmatpush1.xpose.msra.mxu0 0.0
    %160 = vmatprep.subr.mxu0 0.0
    %161 = vmatpush1.xpose.msra.mxu0 0.0
    %162 = vmatprep.subr.mxu0 0.0
    %163 = vmatpush1.xpose.msra.mxu0 0.0
    %164 = vmatprep.subr.mxu0 0.0
    %165 = vmatpush1.xpose.msra.mxu0 0.0
    %166 = vmatprep.subr.mxu0 0.0
    %167 = vmatpush1.xpose.msra.mxu0 0.0
    %168 = vmatprep.subr.mxu0 0.0
    %169 = vmatpush1.xpose.msra.mxu0 0.0
    %170 = vmatprep.subr.mxu0 0.0
    %171 = vmatpush1.xpose.msra.mxu0 0.0
    %172 = vmatprep.subr.mxu0 0.0
    %173 = vmatpush1.xpose.msra.mxu0 0.0
    %174 = vmatprep.subr.mxu0 0.0
    %175 = vmatpush1.xpose.msra.mxu0 0.0
    %176 = vmatprep.subr.mxu0 0.0
    %177 = vmatpush1.xpose.msra.mxu0 0.0
    %178 = vmatprep.subr.mxu0 0.0
    %179 = vmatpush1.xpose.msra.mxu0 0.0
    %180 = vmatprep.subr.mxu0 0.0
    %181 = vmatpush1.xpose.msra.mxu0 0.0
    %182 = vmatprep.subr.mxu0 0.0
    %183 = vmatpush1.xpose.msra.mxu0 0.0
    %184 = vmatprep.subr.mxu0 0.0
    %185 = vmatpush1.xpose.msra.mxu0 0.0
    %186 = vmatprep.subr.mxu0 0.0
    %187 = vmatpush1.xpose.msra.mxu0 0.0
    %188 = vmatprep.subr.mxu0 0.0
    %189 = vmatpush1.xpose.msra.mxu0 0.0
    %190 = vmatprep.subr.mxu0 0.0
    %191 = vmatpush1.xpose.msra.mxu0 0.0
    %192 = vmatprep.subr.mxu0 0.0
    %193 = vmatpush1.xpose.msra.mxu0 0.0
    %194 = vmatprep.subr.mxu0 0.0
    %195 = vmatpush1.xpose.msra.mxu0 0.0
    %196 = vmatprep.subr.mxu0 0.0
    %197 = vmatpush1.xpose.msra.mxu0 0.0
    %198 = vmatprep.subr.mxu0 0.0
    %199 = vmatpush1.xpose.msra.mxu0 0.0
    %200 = vmatprep.subr.mxu0 0.0
    %201 = vmatpush1.xpose.msra.mxu0 0.0
    %202 = vmatprep.subr.mxu0 0.0
    %203 = vmatpush1.xpose.msra.mxu0 0.0
    %204 = vmatprep.subr.mxu0 0.0
    %205 = vmatpush1.xpose.msra.mxu0 0.0
    %206 = vmatprep.subr.mxu0 0.0
    %207 = vmatpush1.xpose.msra.mxu0 0.0
    %208 = vmatprep.subr.mxu0 0.0
    %209 = vmatpush1.xpose.msra.mxu0 0.0
    %210 = vmatprep.subr.mxu0 0.0
    %211 = vmatpush1.xpose.msra.mxu0 0.0
    %212 = vmatprep.subr.mxu0 0.0
    %213 = vmatpush1.xpose.msra.mxu0 0.0
    %214 = vmatprep.subr.mxu0 0.0
    %215 = vmatpush1.xpose.msra.mxu0 0.0
    %216 = vmatprep.mubr.f32.mxu0 0.0
    %217 = vmatmul.mubr.f32.gmra.mrb[0].mxu0 %v144
    %v218 = vpop.f32.mrb[0].mxu0
    %v219 = vadd.f32 %v17, %v218
    %v220 = vpop.f32.mrb[0].mxu0
    %221 = vmatprep.mubr.f32.mxu0 0.0
    %222 = vmatmul.mubr.f32.gmra.mrb[0].mxu0 %v146
    %v223 = vpop.f32.mrb[0].mxu0
    %v224 = vadd.f32 %v18, %v223
    %v225 = vpop.f32.mrb[0].mxu0
    %226 = vdwg.mxu0
    %vm227 = vcmask 130048
    %v228 = vsel %vm227, %v219, -inf
    %229 = vmax.xlane.f32.xlu0 %v228
    %v230 = vpop.xlane.xlu0 %229
    %v231 = vsel %vm227, %v224, -inf
    %232 = vmax.xlane.f32.xlu0 %v231
    %v233 = vpop.xlane.xlu0 %232
    %v234 = vsub.f32 %v219, %v230
    %v235 = vsub.f32 %v224, %v233
    %v236 = vmul.f32 %v234, 1.442695
    %v237 = vpow.pop %v236
    %v238 = vmul.f32 %v235, 1.442695
    %v239 = vpow.pop %v238
    %v240 = vsel %vm227, %v237, 0.0
    %241 = vadd.xlane.f32.xlu0 %v240
    %v242 = vpop.xlane.xlu0 %241
    %v243 = vsel %vm227, %v239, 0.0
    %244 = vadd.xlane.f32.xlu0 %v243
    %v245 = vpop.xlane.xlu0 %244
    %v246 = vrcp.pop %v242
    %v247 = vrcp.pop %v245
    %v248 = vmul.f32 %v237, %v246
    %v249 = vmul.f32 %v239, %v247
    %250 = vrot.lane.b32.xlu0 %v129, 64
    %v251 = vpop.permute.xlu0 %250
    %252 = vrot.lane.b32.xlu0 %v134, 64
    %v253 = vpop.permute.xlu0 %252
    %v257 = vsel %vm227, %v248, 0
    %v260 = vsel %vm227, %v249, 0
    %262 = vmatprep.subr.mxu0 0.0
    %263 = vmatpush1.msra.mxu0 %v251
    %264 = vmatprep.subr.mxu0 0.0
    %265 = vmatpush1.msra.mxu0 %v253
    %266 = vmatprep.subr.mxu0 0.0
    %267 = vmatpush1.msra.mxu0 0.0
    %268 = vmatprep.subr.mxu0 0.0
    %269 = vmatpush1.msra.mxu0 0.0
    %270 = vmatprep.subr.mxu0 0.0
    %271 = vmatpush1.msra.mxu0 0.0
    %272 = vmatprep.subr.mxu0 0.0
    %273 = vmatpush1.msra.mxu0 0.0
    %274 = vmatprep.subr.mxu0 0.0
    %275 = vmatpush1.msra.mxu0 0.0
    %276 = vmatprep.subr.mxu0 0.0
    %277 = vmatpush1.msra.mxu0 0.0
    %278 = vmatprep.subr.mxu0 0.0
    %279 = vmatpush1.msra.mxu0 0.0
    %280 = vmatprep.subr.mxu0 0.0
    %281 = vmatpush1.msra.mxu0 0.0
    %282 = vmatprep.subr.mxu0 0.0
    %283 = vmatpush1.msra.mxu0 0.0
    %284 = vmatprep.subr.mxu0 0.0
    %285 = vmatpush1.msra.mxu0 0.0
    %286 = vmatprep.subr.mxu0 0.0
    %287 = vmatpush1.msra.mxu0 0.0
    %288 = vmatprep.subr.mxu0 0.0
    %289 = vmatpush1.msra.mxu0 0.0
    %290 = vmatprep.subr.mxu0 0.0
    %291 = vmatpush1.msra.mxu0 0.0
    %292 = vmatprep.subr.mxu0 0.0
    %293 = vmatpush1.msra.mxu0 0.0
    %294 = vmatprep.subr.mxu0 0.0
    %295 = vmatpush1.msra.mxu0 0.0
    %296 = vmatprep.subr.mxu0 0.0
    %297 = vmatpush1.msra.mxu0 0.0
    %298 = vmatprep.subr.mxu0 0.0
    %299 = vmatpush1.msra.mxu0 0.0
    %300 = vmatprep.subr.mxu0 0.0
    %301 = vmatpush1.msra.mxu0 0.0
    %302 = vmatprep.subr.mxu0 0.0
    %303 = vmatpush1.msra.mxu0 0.0
    %304 = vmatprep.subr.mxu0 0.0
    %305 = vmatpush1.msra.mxu0 0.0
    %306 = vmatprep.subr.mxu0 0.0
    %307 = vmatpush1.msra.mxu0 0.0
    %308 = vmatprep.subr.mxu0 0.0
    %309 = vmatpush1.msra.mxu0 0.0
    %310 = vmatprep.subr.mxu0 0.0
    %311 = vmatpush1.msra.mxu0 0.0
    %312 = vmatprep.subr.mxu0 0.0
    %313 = vmatpush1.msra.mxu0 0.0
    %314 = vmatprep.subr.mxu0 0.0
    %315 = vmatpush1.msra.mxu0 0.0
    %316 = vmatprep.subr.mxu0 0.0
    %317 = vmatpush1.msra.mxu0 0.0
    %318 = vmatprep.subr.mxu0 0.0
    %319 = vmatpush1.msra.mxu0 0.0
    %320 = vmatprep.subr.mxu0 0.0
    %321 = vmatpush1.msra.mxu0 0.0
    %322 = vmatprep.subr.mxu0 0.0
    %323 = vmatpush1.msra.mxu0 0.0
    %324 = vmatprep.subr.mxu0 0.0
    %325 = vmatpush1.msra.mxu0 0.0
    %326 = vmatprep.mubr.f32.mxu0 0.0
    %327 = vmatmul.mubr.f32.gmra.mrb[0].mxu0 %v257
    %v328 = vpop.f32.mrb[0].mxu0
    %v329 = vadd.f32 0.0, %v328
    %v330 = vpop.f32.mrb[0].mxu0
    %331 = vmatprep.mubr.f32.mxu0 0.0
    %332 = vmatmul.mubr.f32.gmra.mrb[0].mxu0 %v260
    %v333 = vpop.f32.mrb[0].mxu0
    %v334 = vadd.f32 0.0, %v333
    %v335 = vpop.f32.mrb[0].mxu0
    %336 = vdwg.mxu0
    %v337 = vld [vmem:[%s2] sm:$0xff]
    %338 = vrot.lane.b32.xlu0 %v129, 120
    %v339 = vpop.permute.xlu0 %338
    %340 = vrot.lane.b32.xlu0 %v134, 120
    %v341 = vpop.permute.xlu0 %340
    %342 = vrot.lane.b32.xlu0 %v129, 88
    %v343 = vpop.permute.xlu0 %342
    %344 = vrot.lane.b32.xlu0 %v134, 88
    %v345 = vpop.permute.xlu0 %344
    %v346 = vsel %vm143, %v339, 0
    %v348 = vsel %vm143, %v341, 0
    %v350 = vsel %vm143, %v343, 0
    %v352 = vsel %vm143, %v345, 0
    %354 = vmatprep.subr.mxu0 0.0
    %355 = vmatpush1.xpose.msra.mxu0 %v350
    %356 = vmatprep.subr.mxu0 0.0
    %357 = vmatpush1.xpose.msra.mxu0 %v352
    %358 = vmatprep.subr.mxu0 0.0
    %359 = vmatpush1.xpose.msra.mxu0 0.0
    %360 = vmatprep.subr.mxu0 0.0
    %361 = vmatpush1.xpose.msra.mxu0 0.0
    %362 = vmatprep.subr.mxu0 0.0
    %363 = vmatpush1.xpose.msra.mxu0 0.0
    %364 = vmatprep.subr.mxu0 0.0
    %365 = vmatpush1.xpose.msra.mxu0 0.0
    %366 = vmatprep.subr.mxu0 0.0
    %367 = vmatpush1.xpose.msra.mxu0 0.0
    %368 = vmatprep.subr.mxu0 0.0
    %369 = vmatpush1.xpose.msra.mxu0 0.0
    %370 = vmatprep.subr.mxu0 0.0
    %371 = vmatpush1.xpose.msra.mxu0 0.0
    %372 = vmatprep.subr.mxu0 0.0
    %373 = vmatpush1.xpose.msra.mxu0 0.0
    %374 = vmatprep.subr.mxu0 0.0
    %375 = vmatpush1.xpose.msra.mxu0 0.0
    %376 = vmatprep.subr.mxu0 0.0
    %377 = vmatpush1.xpose.msra.mxu0 0.0
    %378 = vmatprep.subr.mxu0 0.0
    %379 = vmatpush1.xpose.msra.mxu0 0.0
    %380 = vmatprep.subr.mxu0 0.0
    %381 = vmatpush1.xpose.msra.mxu0 0.0
    %382 = vmatprep.subr.mxu0 0.0
    %383 = vmatpush1.xpose.msra.mxu0 0.0
    %384 = vmatprep.subr.mxu0 0.0
    %385 = vmatpush1.xpose.msra.mxu0 0.0
    %386 = vmatprep.subr.mxu0 0.0
    %387 = vmatpush1.xpose.msra.mxu0 0.0
    %388 = vmatprep.subr.mxu0 0.0
    %389 = vmatpush1.xpose.msra.mxu0 0.0
    %390 = vmatprep.subr.mxu0 0.0
    %391 = vmatpush1.xpose.msra.mxu0 0.0
    %392 = vmatprep.subr.mxu0 0.0
    %393 = vmatpush1.xpose.msra.mxu0 0.0
    %394 = vmatprep.subr.mxu0 0.0
    %395 = vmatpush1.xpose.msra.mxu0 0.0
    %396 = vmatprep.subr.mxu0 0.0
    %397 = vmatpush1.xpose.msra.mxu0 0.0
    %398 = vmatprep.subr.mxu0 0.0
    %399 = vmatpush1.xpose.msra.mxu0 0.0
    %400 = vmatprep.subr.mxu0 0.0
    %401 = vmatpush1.xpose.msra.mxu0 0.0
    %402 = vmatprep.subr.mxu0 0.0
    %403 = vmatpush1.xpose.msra.mxu0 0.0
    %404 = vmatprep.subr.mxu0 0.0
    %405 = vmatpush1.xpose.msra.mxu0 0.0
    %406 = vmatprep.subr.mxu0 0.0
    %407 = vmatpush1.xpose.msra.mxu0 0.0
    %408 = vmatprep.subr.mxu0 0.0
    %409 = vmatpush1.xpose.msra.mxu0 0.0
    %410 = vmatprep.subr.mxu0 0.0
    %411 = vmatpush1.xpose.msra.mxu0 0.0
    %412 = vmatprep.subr.mxu0 0.0
    %413 = vmatpush1.xpose.msra.mxu0 0.0
    %414 = vmatprep.subr.mxu0 0.0
    %415 = vmatpush1.xpose.msra.mxu0 0.0
    %416 = vmatprep.subr.mxu0 0.0
    %417 = vmatpush1.xpose.msra.mxu0 0.0
    %418 = vmatprep.mubr.f32.mxu0 0.0
    %419 = vmatmul.mubr.f32.gmra.mrb[0].mxu0 %v346
    %v420 = vpop.f32.mrb[0].mxu0
    %v421 = vadd.f32 %v17, %v420
    %v422 = vpop.f32.mrb[0].mxu0
    %423 = vmatprep.mubr.f32.mxu0 0.0
    %424 = vmatmul.mubr.f32.gmra.mrb[0].mxu0 %v348
    %v425 = vpop.f32.mrb[0].mxu0
    %v426 = vadd.f32 %v18, %v425
    %v427 = vpop.f32.mrb[0].mxu0
    %428 = vdwg.mxu0
    %v429 = vsel %vm227, %v421, -inf
    %430 = vmax.xlane.f32.xlu0 %v429
    %v431 = vpop.xlane.xlu0 %430
    %v432 = vsel %vm227, %v426, -inf
    %433 = vmax.xlane.f32.xlu0 %v432
    %v434 = vpop.xlane.xlu0 %433
    %v435 = vsub.f32 %v421, %v431
    %v436 = vsub.f32 %v426, %v434
    %v437 = vmul.f32 %v435, 1.442695
    %v438 = vpow.pop %v437
    %v439 = vmul.f32 %v436, 1.442695
    %v440 = vpow.pop %v439
    %v441 = vsel %vm227, %v438, 0.0
    %442 = vadd.xlane.f32.xlu0 %v441
    %v443 = vpop.xlane.xlu0 %442
    %v444 = vsel %vm227, %v440, 0.0
    %445 = vadd.xlane.f32.xlu0 %v444
    %v446 = vpop.xlane.xlu0 %445
    %v447 = vrcp.pop %v443
    %v448 = vrcp.pop %v446
    %v449 = vmul.f32 %v438, %v447
    %v450 = vmul.f32 %v440, %v448
    %451 = vrot.lane.b32.xlu0 %v129, 56
    %v452 = vpop.permute.xlu0 %451
    %453 = vrot.lane.b32.xlu0 %v134, 56
    %v454 = vpop.permute.xlu0 %453
    %v458 = vsel %vm227, %v449, 0
    %v461 = vsel %vm227, %v450, 0
    %463 = vmatprep.subr.mxu0 0.0
    %464 = vmatpush1.msra.mxu0 %v452
    %465 = vmatprep.subr.mxu0 0.0
    %466 = vmatpush1.msra.mxu0 %v454
    %467 = vmatprep.subr.mxu0 0.0
    %468 = vmatpush1.msra.mxu0 0.0
    %469 = vmatprep.subr.mxu0 0.0
    %470 = vmatpush1.msra.mxu0 0.0
    %471 = vmatprep.subr.mxu0 0.0
    %472 = vmatpush1.msra.mxu0 0.0
    %473 = vmatprep.subr.mxu0 0.0
    %474 = vmatpush1.msra.mxu0 0.0
    %475 = vmatprep.subr.mxu0 0.0
    %476 = vmatpush1.msra.mxu0 0.0
    %477 = vmatprep.subr.mxu0 0.0
    %478 = vmatpush1.msra.mxu0 0.0
    %479 = vmatprep.subr.mxu0 0.0
    %480 = vmatpush1.msra.mxu0 0.0
    %481 = vmatprep.subr.mxu0 0.0
    %482 = vmatpush1.msra.mxu0 0.0
    %483 = vmatprep.subr.mxu0 0.0
    %484 = vmatpush1.msra.mxu0 0.0
    %485 = vmatprep.subr.mxu0 0.0
    %486 = vmatpush1.msra.mxu0 0.0
    %487 = vmatprep.subr.mxu0 0.0
    %488 = vmatpush1.msra.mxu0 0.0
    %489 = vmatprep.subr.mxu0 0.0
    %490 = vmatpush1.msra.mxu0 0.0
    %491 = vmatprep.subr.mxu0 0.0
    %492 = vmatpush1.msra.mxu0 0.0
    %493 = vmatprep.subr.mxu0 0.0
    %494 = vmatpush1.msra.mxu0 0.0
    %495 = vmatprep.subr.mxu0 0.0
    %496 = vmatpush1.msra.mxu0 0.0
    %497 = vmatprep.subr.mxu0 0.0
    %498 = vmatpush1.msra.mxu0 0.0
    %499 = vmatprep.subr.mxu0 0.0
    %500 = vmatpush1.msra.mxu0 0.0
    %501 = vmatprep.subr.mxu0 0.0
    %502 = vmatpush1.msra.mxu0 0.0
    %503 = vmatprep.subr.mxu0 0.0
    %504 = vmatpush1.msra.mxu0 0.0
    %505 = vmatprep.subr.mxu0 0.0
    %506 = vmatpush1.msra.mxu0 0.0
    %507 = vmatprep.subr.mxu0 0.0
    %508 = vmatpush1.msra.mxu0 0.0
    %509 = vmatprep.subr.mxu0 0.0
    %510 = vmatpush1.msra.mxu0 0.0
    %511 = vmatprep.subr.mxu0 0.0
    %512 = vmatpush1.msra.mxu0 0.0
    %513 = vmatprep.subr.mxu0 0.0
    %514 = vmatpush1.msra.mxu0 0.0
    %515 = vmatprep.subr.mxu0 0.0
    %516 = vmatpush1.msra.mxu0 0.0
    %517 = vmatprep.subr.mxu0 0.0
    %518 = vmatpush1.msra.mxu0 0.0
    %519 = vmatprep.subr.mxu0 0.0
    %520 = vmatpush1.msra.mxu0 0.0
    %521 = vmatprep.subr.mxu0 0.0
    %522 = vmatpush1.msra.mxu0 0.0
    %523 = vmatprep.subr.mxu0 0.0
    %524 = vmatpush1.msra.mxu0 0.0
    %525 = vmatprep.subr.mxu0 0.0
    %526 = vmatpush1.msra.mxu0 0.0
    %527 = vmatprep.mubr.f32.mxu0 0.0
    %528 = vmatmul.mubr.f32.gmra.mrb[0].mxu0 %v458
    %v529 = vpop.f32.mrb[0].mxu0
    %v530 = vadd.f32 0.0, %v529
    %v531 = vpop.f32.mrb[0].mxu0
    %532 = vmatprep.mubr.f32.mxu0 0.0
    %533 = vmatmul.mubr.f32.gmra.mrb[0].mxu0 %v461
    %v534 = vpop.f32.mrb[0].mxu0
    %v535 = vadd.f32 0.0, %v534
    %v536 = vpop.f32.mrb[0].mxu0
    %537 = vdwg.mxu0
    %v538 = vld [vmem:[%s2 + $0x8] sm:$0xff]
    %540 = vrot.lane.b32.xlu0 %v538, 32
    %v541 = vpop.permute.xlu0 %540
    %v544 = vsel %vm143, %v530, 0
    %v547 = vsel %vm143, %v535, 0
    %549 = vmatprep.subr.mxu0 0.0
    %550 = vmatpush1.msra.mxu0 %v541
    %551 = vmatprep.subr.mxu0 0.0
    %552 = vmatpush1.msra.mxu0 0.0
    %553 = vmatprep.subr.mxu0 0.0
    %554 = vmatpush1.msra.mxu0 0.0
    %555 = vmatprep.subr.mxu0 0.0
    %556 = vmatpush1.msra.mxu0 0.0
    %557 = vmatprep.subr.mxu0 0.0
    %558 = vmatpush1.msra.mxu0 0.0
    %559 = vmatprep.subr.mxu0 0.0
    %560 = vmatpush1.msra.mxu0 0.0
    %561 = vmatprep.subr.mxu0 0.0
    %562 = vmatpush1.msra.mxu0 0.0
    %563 = vmatprep.subr.mxu0 0.0
    %564 = vmatpush1.msra.mxu0 0.0
    %565 = vmatprep.subr.mxu0 0.0
    %566 = vmatpush1.msra.mxu0 0.0
    %567 = vmatprep.subr.mxu0 0.0
    %568 = vmatpush1.msra.mxu0 0.0
    %569 = vmatprep.subr.mxu0 0.0
    %570 = vmatpush1.msra.mxu0 0.0
    %571 = vmatprep.subr.mxu0 0.0
    %572 = vmatpush1.msra.mxu0 0.0
    %573 = vmatprep.subr.mxu0 0.0
    %574 = vmatpush1.msra.mxu0 0.0
    %575 = vmatprep.subr.mxu0 0.0
    %576 = vmatpush1.msra.mxu0 0.0
    %577 = vmatprep.subr.mxu0 0.0
    %578 = vmatpush1.msra.mxu0 0.0
    %579 = vmatprep.subr.mxu0 0.0
    %580 = vmatpush1.msra.mxu0 0.0
    %581 = vmatprep.subr.mxu0 0.0
    %582 = vmatpush1.msra.mxu0 0.0
    %583 = vmatprep.subr.mxu0 0.0
    %584 = vmatpush1.msra.mxu0 0.0
    %585 = vmatprep.subr.mxu0 0.0
    %586 = vmatpush1.msra.mxu0 0.0
    %587 = vmatprep.subr.mxu0 0.0
    %588 = vmatpush1.msra.mxu0 0.0
    %589 = vmatprep.subr.mxu0 0.0
    %590 = vmatpush1.msra.mxu0 0.0
    %591 = vmatprep.subr.mxu0 0.0
    %592 = vmatpush1.msra.mxu0 0.0
    %593 = vmatprep.subr.mxu0 0.0
    %594 = vmatpush1.msra.mxu0 0.0
    %595 = vmatprep.subr.mxu0 0.0
    %596 = vmatpush1.msra.mxu0 0.0
    %597 = vmatprep.subr.mxu0 0.0
    %598 = vmatpush1.msra.mxu0 0.0
    %599 = vmatprep.subr.mxu0 0.0
    %600 = vmatpush1.msra.mxu0 0.0
    %601 = vmatprep.subr.mxu0 0.0
    %602 = vmatpush1.msra.mxu0 0.0
    %603 = vmatprep.subr.mxu0 0.0
    %604 = vmatpush1.msra.mxu0 0.0
    %605 = vmatprep.subr.mxu0 0.0
    %606 = vmatpush1.msra.mxu0 0.0
    %607 = vmatprep.subr.mxu0 0.0
    %608 = vmatpush1.msra.mxu0 0.0
    %609 = vmatprep.subr.mxu0 0.0
    %610 = vmatpush1.msra.mxu0 0.0
    %611 = vmatprep.subr.mxu0 0.0
    %612 = vmatpush1.msra.mxu0 0.0
    %613 = vmatprep.mubr.f32.mxu0 0.0
    %614 = vmatmul.mubr.f32.gmra.mrb[0].mxu0 %v544
    %v615 = vpop.f32.mrb[0].mxu0
    %v616 = vadd.f32 0.0, %v615
    %v617 = vpop.f32.mrb[0].mxu0
    %618 = vmatprep.mubr.f32.mxu0 0.0
    %619 = vmatmul.mubr.f32.gmra.mrb[0].mxu0 %v547
    %v620 = vpop.f32.mrb[0].mxu0
    %v621 = vadd.f32 0.0, %v620
    %v622 = vpop.f32.mrb[0].mxu0
    %623 = vdwg.mxu0
    %625 = vrot.lane.b32.xlu0 %v337, 32
    %v626 = vpop.permute.xlu0 %625
    %v629 = vsel %vm143, %v329, 0
    %v632 = vsel %vm143, %v334, 0
    %634 = vmatprep.subr.mxu0 0.0
    %635 = vmatpush1.msra.mxu0 %v626
    %636 = vmatprep.subr.mxu0 0.0
    %637 = vmatpush1.msra.mxu0 0.0
    %638 = vmatprep.subr.mxu0 0.0
    %639 = vmatpush1.msra.mxu0 0.0
    %640 = vmatprep.subr.mxu0 0.0
    %641 = vmatpush1.msra.mxu0 0.0
    %642 = vmatprep.subr.mxu0 0.0
    %643 = vmatpush1.msra.mxu0 0.0
    %644 = vmatprep.subr.mxu0 0.0
    %645 = vmatpush1.msra.mxu0 0.0
    %646 = vmatprep.subr.mxu0 0.0
    %647 = vmatpush1.msra.mxu0 0.0
    %648 = vmatprep.subr.mxu0 0.0
    %649 = vmatpush1.msra.mxu0 0.0
    %650 = vmatprep.subr.mxu0 0.0
    %651 = vmatpush1.msra.mxu0 0.0
    %652 = vmatprep.subr.mxu0 0.0
    %653 = vmatpush1.msra.mxu0 0.0
    %654 = vmatprep.subr.mxu0 0.0
    %655 = vmatpush1.msra.mxu0 0.0
    %656 = vmatprep.subr.mxu0 0.0
    %657 = vmatpush1.msra.mxu0 0.0
    %658 = vmatprep.subr.mxu0 0.0
    %659 = vmatpush1.msra.mxu0 0.0
    %660 = vmatprep.subr.mxu0 0.0
    %661 = vmatpush1.msra.mxu0 0.0
    %662 = vmatprep.subr.mxu0 0.0
    %663 = vmatpush1.msra.mxu0 0.0
    %664 = vmatprep.subr.mxu0 0.0
    %665 = vmatpush1.msra.mxu0 0.0
    %666 = vmatprep.subr.mxu0 0.0
    %667 = vmatpush1.msra.mxu0 0.0
    %668 = vmatprep.subr.mxu0 0.0
    %669 = vmatpush1.msra.mxu0 0.0
    %670 = vmatprep.subr.mxu0 0.0
    %671 = vmatpush1.msra.mxu0 0.0
    %672 = vmatprep.subr.mxu0 0.0
    %673 = vmatpush1.msra.mxu0 0.0
    %674 = vmatprep.subr.mxu0 0.0
    %675 = vmatpush1.msra.mxu0 0.0
    %676 = vmatprep.subr.mxu0 0.0
    %677 = vmatpush1.msra.mxu0 0.0
    %678 = vmatprep.subr.mxu0 0.0
    %679 = vmatpush1.msra.mxu0 0.0
    %680 = vmatprep.subr.mxu0 0.0
    %681 = vmatpush1.msra.mxu0 0.0
    %682 = vmatprep.subr.mxu0 0.0
    %683 = vmatpush1.msra.mxu0 0.0
    %684 = vmatprep.subr.mxu0 0.0
    %685 = vmatpush1.msra.mxu0 0.0
    %686 = vmatprep.subr.mxu0 0.0
    %687 = vmatpush1.msra.mxu0 0.0
    %688 = vmatprep.subr.mxu0 0.0
    %689 = vmatpush1.msra.mxu0 0.0
    %690 = vmatprep.subr.mxu0 0.0
    %691 = vmatpush1.msra.mxu0 0.0
    %692 = vmatprep.subr.mxu0 0.0
    %693 = vmatpush1.msra.mxu0 0.0
    %694 = vmatprep.subr.mxu0 0.0
    %695 = vmatpush1.msra.mxu0 0.0
    %696 = vmatprep.subr.mxu0 0.0
    %697 = vmatpush1.msra.mxu0 0.0
    %698 = vmatprep.mubr.f32.mxu0 0.0
    %699 = vmatmul.mubr.f32.gmra.mrb[0].mxu0 %v629
    %v700 = vpop.f32.mrb[0].mxu0
    %v701 = vadd.f32 %v616, %v700
    %v702 = vpop.f32.mrb[0].mxu0
    %703 = vmatprep.mubr.f32.mxu0 0.0
    %704 = vmatmul.mubr.f32.gmra.mrb[0].mxu0 %v632
    %v705 = vpop.f32.mrb[0].mxu0
    %v706 = vadd.f32 %v621, %v705
    %v707 = vpop.f32.mrb[0].mxu0
    %708 = vdwg.mxu0
    %709 = vrot.lane.b32.xlu0 %v129, 112
    %v710 = vpop.permute.xlu0 %709
    %711 = vrot.lane.b32.xlu0 %v134, 112
    %v712 = vpop.permute.xlu0 %711
    %713 = vrot.lane.b32.xlu0 %v129, 80
    %v714 = vpop.permute.xlu0 %713
    %715 = vrot.lane.b32.xlu0 %v134, 80
    %v716 = vpop.permute.xlu0 %715
    %v717 = vsel %vm143, %v710, 0
    %v719 = vsel %vm143, %v712, 0
    %v721 = vsel %vm143, %v714, 0
    %v723 = vsel %vm143, %v716, 0
    %725 = vmatprep.subr.mxu0 0.0
    %726 = vmatpush1.xpose.msra.mxu0 %v721
    %727 = vmatprep.subr.mxu0 0.0
    %728 = vmatpush1.xpose.msra.mxu0 %v723
    %729 = vmatprep.subr.mxu0 0.0
    %730 = vmatpush1.xpose.msra.mxu0 0.0
    %731 = vmatprep.subr.mxu0 0.0
    %732 = vmatpush1.xpose.msra.mxu0 0.0
    %733 = vmatprep.subr.mxu0 0.0
    %734 = vmatpush1.xpose.msra.mxu0 0.0
    %735 = vmatprep.subr.mxu0 0.0
    %736 = vmatpush1.xpose.msra.mxu0 0.0
    %737 = vmatprep.subr.mxu0 0.0
    %738 = vmatpush1.xpose.msra.mxu0 0.0
    %739 = vmatprep.subr.mxu0 0.0
    %740 = vmatpush1.xpose.msra.mxu0 0.0
    %741 = vmatprep.subr.mxu0 0.0
    %742 = vmatpush1.xpose.msra.mxu0 0.0
    %743 = vmatprep.subr.mxu0 0.0
    %744 = vmatpush1.xpose.msra.mxu0 0.0
    %745 = vmatprep.subr.mxu0 0.0
    %746 = vmatpush1.xpose.msra.mxu0 0.0
    %747 = vmatprep.subr.mxu0 0.0
    %748 = vmatpush1.xpose.msra.mxu0 0.0
    %749 = vmatprep.subr.mxu0 0.0
    %750 = vmatpush1.xpose.msra.mxu0 0.0
    %751 = vmatprep.subr.mxu0 0.0
    %752 = vmatpush1.xpose.msra.mxu0 0.0
    %753 = vmatprep.subr.mxu0 0.0
    %754 = vmatpush1.xpose.msra.mxu0 0.0
    %755 = vmatprep.subr.mxu0 0.0
    %756 = vmatpush1.xpose.msra.mxu0 0.0
    %757 = vmatprep.subr.mxu0 0.0
    %758 = vmatpush1.xpose.msra.mxu0 0.0
    %759 = vmatprep.subr.mxu0 0.0
    %760 = vmatpush1.xpose.msra.mxu0 0.0
    %761 = vmatprep.subr.mxu0 0.0
    %762 = vmatpush1.xpose.msra.mxu0 0.0
    %763 = vmatprep.subr.mxu0 0.0
    %764 = vmatpush1.xpose.msra.mxu0 0.0
    %765 = vmatprep.subr.mxu0 0.0
    %766 = vmatpush1.xpose.msra.mxu0 0.0
    %767 = vmatprep.subr.mxu0 0.0
    %768 = vmatpush1.xpose.msra.mxu0 0.0
    %769 = vmatprep.subr.mxu0 0.0
    %770 = vmatpush1.xpose.msra.mxu0 0.0
    %771 = vmatprep.subr.mxu0 0.0
    %772 = vmatpush1.xpose.msra.mxu0 0.0
    %773 = vmatprep.subr.mxu0 0.0
    %774 = vmatpush1.xpose.msra.mxu0 0.0
    %775 = vmatprep.subr.mxu0 0.0
    %776 = vmatpush1.xpose.msra.mxu0 0.0
    %777 = vmatprep.subr.mxu0 0.0
    %778 = vmatpush1.xpose.msra.mxu0 0.0
    %779 = vmatprep.subr.mxu0 0.0
    %780 = vmatpush1.xpose.msra.mxu0 0.0
    %781 = vmatprep.subr.mxu0 0.0
    %782 = vmatpush1.xpose.msra.mxu0 0.0
    %783 = vmatprep.subr.mxu0 0.0
    %784 = vmatpush1.xpose.msra.mxu0 0.0
    %785 = vmatprep.subr.mxu0 0.0
    %786 = vmatpush1.xpose.msra.mxu0 0.0
    %787 = vmatprep.subr.mxu0 0.0
    %788 = vmatpush1.xpose.msra.mxu0 0.0
    %789 = vmatprep.mubr.f32.mxu0 0.0
    %790 = vmatmul.mubr.f32.gmra.mrb[0].mxu0 %v717
    %v791 = vpop.f32.mrb[0].mxu0
    %v792 = vadd.f32 %v17, %v791
    %v793 = vpop.f32.mrb[0].mxu0
    %794 = vmatprep.mubr.f32.mxu0 0.0
    %795 = vmatmul.mubr.f32.gmra.mrb[0].mxu0 %v719
    %v796 = vpop.f32.mrb[0].mxu0
    %v797 = vadd.f32 %v18, %v796
    %v798 = vpop.f32.mrb[0].mxu0
    %799 = vdwg.mxu0
    %v800 = vsel %vm227, %v792, -inf
    %801 = vmax.xlane.f32.xlu0 %v800
    %v802 = vpop.xlane.xlu0 %801
    %v803 = vsel %vm227, %v797, -inf
    %804 = vmax.xlane.f32.xlu0 %v803
    %v805 = vpop.xlane.xlu0 %804
    %v806 = vsub.f32 %v792, %v802
    %v807 = vsub.f32 %v797, %v805
    %v808 = vmul.f32 %v806, 1.442695
    %v809 = vpow.pop %v808
    %v810 = vmul.f32 %v807, 1.442695
    %v811 = vpow.pop %v810
    %v812 = vsel %vm227, %v809, 0.0
    %813 = vadd.xlane.f32.xlu0 %v812
    %v814 = vpop.xlane.xlu0 %813
    %v815 = vsel %vm227, %v811, 0.0
    %816 = vadd.xlane.f32.xlu0 %v815
    %v817 = vpop.xlane.xlu0 %816
    %v818 = vrcp.pop %v814
    %v819 = vrcp.pop %v817
    %v820 = vmul.f32 %v809, %v818
    %v821 = vmul.f32 %v811, %v819
    %822 = vrot.lane.b32.xlu0 %v129, 48
    %v823 = vpop.permute.xlu0 %822
    %824 = vrot.lane.b32.xlu0 %v134, 48
    %v825 = vpop.permute.xlu0 %824
    %v829 = vsel %vm227, %v820, 0
    %v832 = vsel %vm227, %v821, 0
    %834 = vmatprep.subr.mxu0 0.0
    %835 = vmatpush1.msra.mxu0 %v823
    %836 = vmatprep.subr.mxu0 0.0
    %837 = vmatpush1.msra.mxu0 %v825
    %838 = vmatprep.subr.mxu0 0.0
    %839 = vmatpush1.msra.mxu0 0.0
    %840 = vmatprep.subr.mxu0 0.0
    %841 = vmatpush1.msra.mxu0 0.0
    %842 = vmatprep.subr.mxu0 0.0
    %843 = vmatpush1.msra.mxu0 0.0
    %844 = vmatprep.subr.mxu0 0.0
    %845 = vmatpush1.msra.mxu0 0.0
    %846 = vmatprep.subr.mxu0 0.0
    %847 = vmatpush1.msra.mxu0 0.0
    %848 = vmatprep.subr.mxu0 0.0
    %849 = vmatpush1.msra.mxu0 0.0
    %850 = vmatprep.subr.mxu0 0.0
    %851 = vmatpush1.msra.mxu0 0.0
    %852 = vmatprep.subr.mxu0 0.0
    %853 = vmatpush1.msra.mxu0 0.0
    %854 = vmatprep.subr.mxu0 0.0
    %855 = vmatpush1.msra.mxu0 0.0
    %856 = vmatprep.subr.mxu0 0.0
    %857 = vmatpush1.msra.mxu0 0.0
    %858 = vmatprep.subr.mxu0 0.0
    %859 = vmatpush1.msra.mxu0 0.0
    %860 = vmatprep.subr.mxu0 0.0
    %861 = vmatpush1.msra.mxu0 0.0
    %862 = vmatprep.subr.mxu0 0.0
    %863 = vmatpush1.msra.mxu0 0.0
    %864 = vmatprep.subr.mxu0 0.0
    %865 = vmatpush1.msra.mxu0 0.0
    %866 = vmatprep.subr.mxu0 0.0
    %867 = vmatpush1.msra.mxu0 0.0
    %868 = vmatprep.subr.mxu0 0.0
    %869 = vmatpush1.msra.mxu0 0.0
    %870 = vmatprep.subr.mxu0 0.0
    %871 = vmatpush1.msra.mxu0 0.0
    %872 = vmatprep.subr.mxu0 0.0
    %873 = vmatpush1.msra.mxu0 0.0
    %874 = vmatprep.subr.mxu0 0.0
    %875 = vmatpush1.msra.mxu0 0.0
    %876 = vmatprep.subr.mxu0 0.0
    %877 = vmatpush1.msra.mxu0 0.0
    %878 = vmatprep.subr.mxu0 0.0
    %879 = vmatpush1.msra.mxu0 0.0
    %880 = vmatprep.subr.mxu0 0.0
    %881 = vmatpush1.msra.mxu0 0.0
    %882 = vmatprep.subr.mxu0 0.0
    %883 = vmatpush1.msra.mxu0 0.0
    %884 = vmatprep.subr.mxu0 0.0
    %885 = vmatpush1.msra.mxu0 0.0
    %886 = vmatprep.subr.mxu0 0.0
    %887 = vmatpush1.msra.mxu0 0.0
    %888 = vmatprep.subr.mxu0 0.0
    %889 = vmatpush1.msra.mxu0 0.0
    %890 = vmatprep.subr.mxu0 0.0
    %891 = vmatpush1.msra.mxu0 0.0
    %892 = vmatprep.subr.mxu0 0.0
    %893 = vmatpush1.msra.mxu0 0.0
    %894 = vmatprep.subr.mxu0 0.0
    %895 = vmatpush1.msra.mxu0 0.0
    %896 = vmatprep.subr.mxu0 0.0
    %897 = vmatpush1.msra.mxu0 0.0
    %898 = vmatprep.mubr.f32.mxu0 0.0
    %899 = vmatmul.mubr.f32.gmra.mrb[0].mxu0 %v829
    %v900 = vpop.f32.mrb[0].mxu0
    %v901 = vadd.f32 0.0, %v900
    %v902 = vpop.f32.mrb[0].mxu0
    %903 = vmatprep.mubr.f32.mxu0 0.0
    %904 = vmatmul.mubr.f32.gmra.mrb[0].mxu0 %v832
    %v905 = vpop.f32.mrb[0].mxu0
    %v906 = vadd.f32 0.0, %v905
    %v907 = vpop.f32.mrb[0].mxu0
    %908 = vdwg.mxu0
    %v909 = vld [vmem:[%s2 + $0x10] sm:$0xff]
    %911 = vrot.lane.b32.xlu0 %v909, 32
    %v912 = vpop.permute.xlu0 %911
    %v915 = vsel %vm143, %v901, 0
    %v918 = vsel %vm143, %v906, 0
    %920 = vmatprep.subr.mxu0 0.0
    %921 = vmatpush1.msra.mxu0 %v912
    %922 = vmatprep.subr.mxu0 0.0
    %923 = vmatpush1.msra.mxu0 0.0
    %924 = vmatprep.subr.mxu0 0.0
    %925 = vmatpush1.msra.mxu0 0.0
    %926 = vmatprep.subr.mxu0 0.0
    %927 = vmatpush1.msra.mxu0 0.0
    %928 = vmatprep.subr.mxu0 0.0
    %929 = vmatpush1.msra.mxu0 0.0
    %930 = vmatprep.subr.mxu0 0.0
    %931 = vmatpush1.msra.mxu0 0.0
    %932 = vmatprep.subr.mxu0 0.0
    %933 = vmatpush1.msra.mxu0 0.0
    %934 = vmatprep.subr.mxu0 0.0
    %935 = vmatpush1.msra.mxu0 0.0
    %936 = vmatprep.subr.mxu0 0.0
    %937 = vmatpush1.msra.mxu0 0.0
    %938 = vmatprep.subr.mxu0 0.0
    %939 = vmatpush1.msra.mxu0 0.0
    %940 = vmatprep.subr.mxu0 0.0
    %941 = vmatpush1.msra.mxu0 0.0
    %942 = vmatprep.subr.mxu0 0.0
    %943 = vmatpush1.msra.mxu0 0.0
    %944 = vmatprep.subr.mxu0 0.0
    %945 = vmatpush1.msra.mxu0 0.0
    %946 = vmatprep.subr.mxu0 0.0
    %947 = vmatpush1.msra.mxu0 0.0
    %948 = vmatprep.subr.mxu0 0.0
    %949 = vmatpush1.msra.mxu0 0.0
    %950 = vmatprep.subr.mxu0 0.0
    %951 = vmatpush1.msra.mxu0 0.0
    %952 = vmatprep.subr.mxu0 0.0
    %953 = vmatpush1.msra.mxu0 0.0
    %954 = vmatprep.subr.mxu0 0.0
    %955 = vmatpush1.msra.mxu0 0.0
    %956 = vmatprep.subr.mxu0 0.0
    %957 = vmatpush1.msra.mxu0 0.0
    %958 = vmatprep.subr.mxu0 0.0
    %959 = vmatpush1.msra.mxu0 0.0
    %960 = vmatprep.subr.mxu0 0.0
    %961 = vmatpush1.msra.mxu0 0.0
    %962 = vmatprep.subr.mxu0 0.0
    %963 = vmatpush1.msra.mxu0 0.0
    %964 = vmatprep.subr.mxu0 0.0
    %965 = vmatpush1.msra.mxu0 0.0
    %966 = vmatprep.subr.mxu0 0.0
    %967 = vmatpush1.msra.mxu0 0.0
    %968 = vmatprep.subr.mxu0 0.0
    %969 = vmatpush1.msra.mxu0 0.0
    %970 = vmatprep.subr.mxu0 0.0
    %971 = vmatpush1.msra.mxu0 0.0
    %972 = vmatprep.subr.mxu0 0.0
    %973 = vmatpush1.msra.mxu0 0.0
    %974 = vmatprep.subr.mxu0 0.0
    %975 = vmatpush1.msra.mxu0 0.0
    %976 = vmatprep.subr.mxu0 0.0
    %977 = vmatpush1.msra.mxu0 0.0
    %978 = vmatprep.subr.mxu0 0.0
    %979 = vmatpush1.msra.mxu0 0.0
    %980 = vmatprep.subr.mxu0 0.0
    %981 = vmatpush1.msra.mxu0 0.0
    %982 = vmatprep.subr.mxu0 0.0
    %983 = vmatpush1.msra.mxu0 0.0
    %984 = vmatprep.mubr.f32.mxu0 0.0
    %985 = vmatmul.mubr.f32.gmra.mrb[0].mxu0 %v915
    %v986 = vpop.f32.mrb[0].mxu0
    %v987 = vadd.f32 0.0, %v986
    %v988 = vpop.f32.mrb[0].mxu0
    %989 = vmatprep.mubr.f32.mxu0 0.0
    %990 = vmatmul.mubr.f32.gmra.mrb[0].mxu0 %v918
    %v991 = vpop.f32.mrb[0].mxu0
    %v992 = vadd.f32 0.0, %v991
    %v993 = vpop.f32.mrb[0].mxu0
    %994 = vdwg.mxu0
    %v995 = vadd.f32 %v701, %v987
    %v996 = vadd.f32 %v706, %v992
    %997 = vrot.lane.b32.xlu0 %v129, 104
    %v998 = vpop.permute.xlu0 %997
    %999 = vrot.lane.b32.xlu0 %v134, 104
    %v1000 = vpop.permute.xlu0 %999
    %1001 = vrot.lane.b32.xlu0 %v129, 72
    %v1002 = vpop.permute.xlu0 %1001
    %1003 = vrot.lane.b32.xlu0 %v134, 72
    %v1004 = vpop.permute.xlu0 %1003
    %v1005 = vsel %vm143, %v998, 0
    %v1007 = vsel %vm143, %v1000, 0
    %v1009 = vsel %vm143, %v1002, 0
    %v1011 = vsel %vm143, %v1004, 0
    %1013 = vmatprep.subr.mxu0 0.0
    %1014 = vmatpush1.xpose.msra.mxu0 %v1009
    %1015 = vmatprep.subr.mxu0 0.0
    %1016 = vmatpush1.xpose.msra.mxu0 %v1011
    %1017 = vmatprep.subr.mxu0 0.0
    %1018 = vmatpush1.xpose.msra.mxu0 0.0
    %1019 = vmatprep.subr.mxu0 0.0
    %1020 = vmatpush1.xpose.msra.mxu0 0.0
    %1021 = vmatprep.subr.mxu0 0.0
    %1022 = vmatpush1.xpose.msra.mxu0 0.0
    %1023 = vmatprep.subr.mxu0 0.0
    %1024 = vmatpush1.xpose.msra.mxu0 0.0
    %1025 = vmatprep.subr.mxu0 0.0
    %1026 = vmatpush1.xpose.msra.mxu0 0.0
    %1027 = vmatprep.subr.mxu0 0.0
    %1028 = vmatpush1.xpose.msra.mxu0 0.0
    %1029 = vmatprep.subr.mxu0 0.0
    %1030 = vmatpush1.xpose.msra.mxu0 0.0
    %1031 = vmatprep.subr.mxu0 0.0
    %1032 = vmatpush1.xpose.msra.mxu0 0.0
    %1033 = vmatprep.subr.mxu0 0.0
    %1034 = vmatpush1.xpose.msra.mxu0 0.0
    %1035 = vmatprep.subr.mxu0 0.0
    %1036 = vmatpush1.xpose.msra.mxu0 0.0
    %1037 = vmatprep.subr.mxu0 0.0
    %1038 = vmatpush1.xpose.msra.mxu0 0.0
    %1039 = vmatprep.subr.mxu0 0.0
    %1040 = vmatpush1.xpose.msra.mxu0 0.0
    %1041 = vmatprep.subr.mxu0 0.0
    %1042 = vmatpush1.xpose.msra.mxu0 0.0
    %1043 = vmatprep.subr.mxu0 0.0
    %1044 = vmatpush1.xpose.msra.mxu0 0.0
    %1045 = vmatprep.subr.mxu0 0.0
    %1046 = vmatpush1.xpose.msra.mxu0 0.0
    %1047 = vmatprep.subr.mxu0 0.0
    %1048 = vmatpush1.xpose.msra.mxu0 0.0
    %1049 = vmatprep.subr.mxu0 0.0
    %1050 = vmatpush1.xpose.msra.mxu0 0.0
    %1051 = vmatprep.subr.mxu0 0.0
    %1052 = vmatpush1.xpose.msra.mxu0 0.0
    %1053 = vmatprep.subr.mxu0 0.0
    %1054 = vmatpush1.xpose.msra.mxu0 0.0
    %1055 = vmatprep.subr.mxu0 0.0
    %1056 = vmatpush1.xpose.msra.mxu0 0.0
    %1057 = vmatprep.subr.mxu0 0.0
    %1058 = vmatpush1.xpose.msra.mxu0 0.0
    %1059 = vmatprep.subr.mxu0 0.0
    %1060 = vmatpush1.xpose.msra.mxu0 0.0
    %1061 = vmatprep.subr.mxu0 0.0
    %1062 = vmatpush1.xpose.msra.mxu0 0.0
    %1063 = vmatprep.subr.mxu0 0.0
    %1064 = vmatpush1.xpose.msra.mxu0 0.0
    %1065 = vmatprep.subr.mxu0 0.0
    %1066 = vmatpush1.xpose.msra.mxu0 0.0
    %1067 = vmatprep.subr.mxu0 0.0
    %1068 = vmatpush1.xpose.msra.mxu0 0.0
    %1069 = vmatprep.subr.mxu0 0.0
    %1070 = vmatpush1.xpose.msra.mxu0 0.0
    %1071 = vmatprep.subr.mxu0 0.0
    %1072 = vmatpush1.xpose.msra.mxu0 0.0
    %1073 = vmatprep.subr.mxu0 0.0
    %1074 = vmatpush1.xpose.msra.mxu0 0.0
    %1075 = vmatprep.subr.mxu0 0.0
    %1076 = vmatpush1.xpose.msra.mxu0 0.0
    %1077 = vmatprep.mubr.f32.mxu0 0.0
    %1078 = vmatmul.mubr.f32.gmra.mrb[0].mxu0 %v1005
    %v1079 = vpop.f32.mrb[0].mxu0
    %v1080 = vadd.f32 %v17, %v1079
    %v1081 = vpop.f32.mrb[0].mxu0
    %1082 = vmatprep.mubr.f32.mxu0 0.0
    %1083 = vmatmul.mubr.f32.gmra.mrb[0].mxu0 %v1007
    %v1084 = vpop.f32.mrb[0].mxu0
    %v1085 = vadd.f32 %v18, %v1084
    %v1086 = vpop.f32.mrb[0].mxu0
    %1087 = vdwg.mxu0
    %v1088 = vsel %vm227, %v1080, -inf
    %1089 = vmax.xlane.f32.xlu0 %v1088
    %v1090 = vpop.xlane.xlu0 %1089
    %v1091 = vsel %vm227, %v1085, -inf
    %1092 = vmax.xlane.f32.xlu0 %v1091
    %v1093 = vpop.xlane.xlu0 %1092
    %v1094 = vsub.f32 %v1080, %v1090
    %v1095 = vsub.f32 %v1085, %v1093
    %v1096 = vmul.f32 %v1094, 1.442695
    %v1097 = vpow.pop %v1096
    %v1098 = vmul.f32 %v1095, 1.442695
    %v1099 = vpow.pop %v1098
    %v1100 = vsel %vm227, %v1097, 0.0
    %1101 = vadd.xlane.f32.xlu0 %v1100
    %v1102 = vpop.xlane.xlu0 %1101
    %v1103 = vsel %vm227, %v1099, 0.0
    %1104 = vadd.xlane.f32.xlu0 %v1103
    %v1105 = vpop.xlane.xlu0 %1104
    %v1106 = vrcp.pop %v1102
    %v1107 = vrcp.pop %v1105
    %v1108 = vmul.f32 %v1097, %v1106
    %v1109 = vmul.f32 %v1099, %v1107
    %1110 = vrot.lane.b32.xlu0 %v129, 40
    %v1111 = vpop.permute.xlu0 %1110
    %1112 = vrot.lane.b32.xlu0 %v134, 40
    %v1113 = vpop.permute.xlu0 %1112
    %v1117 = vsel %vm227, %v1108, 0
    %v1120 = vsel %vm227, %v1109, 0
    %1122 = vmatprep.subr.mxu0 0.0
    %1123 = vmatpush1.msra.mxu0 %v1111
    %1124 = vmatprep.subr.mxu0 0.0
    %1125 = vmatpush1.msra.mxu0 %v1113
    %1126 = vmatprep.subr.mxu0 0.0
    %1127 = vmatpush1.msra.mxu0 0.0
    %1128 = vmatprep.subr.mxu0 0.0
    %1129 = vmatpush1.msra.mxu0 0.0
    %1130 = vmatprep.subr.mxu0 0.0
    %1131 = vmatpush1.msra.mxu0 0.0
    %1132 = vmatprep.subr.mxu0 0.0
    %1133 = vmatpush1.msra.mxu0 0.0
    %1134 = vmatprep.subr.mxu0 0.0
    %1135 = vmatpush1.msra.mxu0 0.0
    %1136 = vmatprep.subr.mxu0 0.0
    %1137 = vmatpush1.msra.mxu0 0.0
    %1138 = vmatprep.subr.mxu0 0.0
    %1139 = vmatpush1.msra.mxu0 0.0
    %1140 = vmatprep.subr.mxu0 0.0
    %1141 = vmatpush1.msra.mxu0 0.0
    %1142 = vmatprep.subr.mxu0 0.0
    %1143 = vmatpush1.msra.mxu0 0.0
    %1144 = vmatprep.subr.mxu0 0.0
    %1145 = vmatpush1.msra.mxu0 0.0
    %1146 = vmatprep.subr.mxu0 0.0
    %1147 = vmatpush1.msra.mxu0 0.0
    %1148 = vmatprep.subr.mxu0 0.0
    %1149 = vmatpush1.msra.mxu0 0.0
    %1150 = vmatprep.subr.mxu0 0.0
    %1151 = vmatpush1.msra.mxu0 0.0
    %1152 = vmatprep.subr.mxu0 0.0
    %1153 = vmatpush1.msra.mxu0 0.0
    %1154 = vmatprep.subr.mxu0 0.0
    %1155 = vmatpush1.msra.mxu0 0.0
    %1156 = vmatprep.subr.mxu0 0.0
    %1157 = vmatpush1.msra.mxu0 0.0
    %1158 = vmatprep.subr.mxu0 0.0
    %1159 = vmatpush1.msra.mxu0 0.0
    %1160 = vmatprep.subr.mxu0 0.0
    %1161 = vmatpush1.msra.mxu0 0.0
    %1162 = vmatprep.subr.mxu0 0.0
    %1163 = vmatpush1.msra.mxu0 0.0
    %1164 = vmatprep.subr.mxu0 0.0
    %1165 = vmatpush1.msra.mxu0 0.0
    %1166 = vmatprep.subr.mxu0 0.0
    %1167 = vmatpush1.msra.mxu0 0.0
    %1168 = vmatprep.subr.mxu0 0.0
    %1169 = vmatpush1.msra.mxu0 0.0
    %1170 = vmatprep.subr.mxu0 0.0
    %1171 = vmatpush1.msra.mxu0 0.0
    %1172 = vmatprep.subr.mxu0 0.0
    %1173 = vmatpush1.msra.mxu0 0.0
    %1174 = vmatprep.subr.mxu0 0.0
    %1175 = vmatpush1.msra.mxu0 0.0
    %1176 = vmatprep.subr.mxu0 0.0
    %1177 = vmatpush1.msra.mxu0 0.0
    %1178 = vmatprep.subr.mxu0 0.0
    %1179 = vmatpush1.msra.mxu0 0.0
    %1180 = vmatprep.subr.mxu0 0.0
    %1181 = vmatpush1.msra.mxu0 0.0
    %1182 = vmatprep.subr.mxu0 0.0
    %1183 = vmatpush1.msra.mxu0 0.0
    %1184 = vmatprep.subr.mxu0 0.0
    %1185 = vmatpush1.msra.mxu0 0.0
    %1186 = vmatprep.mubr.f32.mxu0 0.0
    %1187 = vmatmul.mubr.f32.gmra.mrb[0].mxu0 %v1117
    %v1188 = vpop.f32.mrb[0].mxu0
    %v1189 = vadd.f32 0.0, %v1188
    %v1190 = vpop.f32.mrb[0].mxu0
    %1191 = vmatprep.mubr.f32.mxu0 0.0
    %1192 = vmatmul.mubr.f32.gmra.mrb[0].mxu0 %v1120
    %v1193 = vpop.f32.mrb[0].mxu0
    %v1194 = vadd.f32 0.0, %v1193
    %v1195 = vpop.f32.mrb[0].mxu0
    %1196 = vdwg.mxu0
    %v1197 = vld [vmem:[%s2 + $0x18] sm:$0xff]
    %1199 = vrot.lane.b32.xlu0 %v1197, 32
    %v1200 = vpop.permute.xlu0 %1199
    %v1203 = vsel %vm143, %v1189, 0
    %v1206 = vsel %vm143, %v1194, 0
    %1208 = vmatprep.subr.mxu0 0.0
    %1209 = vmatpush1.msra.mxu0 %v1200
    %1210 = vmatprep.subr.mxu0 0.0
    %1211 = vmatpush1.msra.mxu0 0.0
    %1212 = vmatprep.subr.mxu0 0.0
    %1213 = vmatpush1.msra.mxu0 0.0
    %1214 = vmatprep.subr.mxu0 0.0
    %1215 = vmatpush1.msra.mxu0 0.0
    %1216 = vmatprep.subr.mxu0 0.0
    %1217 = vmatpush1.msra.mxu0 0.0
    %1218 = vmatprep.subr.mxu0 0.0
    %1219 = vmatpush1.msra.mxu0 0.0
    %1220 = vmatprep.subr.mxu0 0.0
    %1221 = vmatpush1.msra.mxu0 0.0
    %1222 = vmatprep.subr.mxu0 0.0
    %1223 = vmatpush1.msra.mxu0 0.0
    %1224 = vmatprep.subr.mxu0 0.0
    %1225 = vmatpush1.msra.mxu0 0.0
    %1226 = vmatprep.subr.mxu0 0.0
    %1227 = vmatpush1.msra.mxu0 0.0
    %1228 = vmatprep.subr.mxu0 0.0
    %1229 = vmatpush1.msra.mxu0 0.0
    %1230 = vmatprep.subr.mxu0 0.0
    %1231 = vmatpush1.msra.mxu0 0.0
    %1232 = vmatprep.subr.mxu0 0.0
    %1233 = vmatpush1.msra.mxu0 0.0
    %1234 = vmatprep.subr.mxu0 0.0
    %1235 = vmatpush1.msra.mxu0 0.0
    %1236 = vmatprep.subr.mxu0 0.0
    %1237 = vmatpush1.msra.mxu0 0.0
    %1238 = vmatprep.subr.mxu0 0.0
    %1239 = vmatpush1.msra.mxu0 0.0
    %1240 = vmatprep.subr.mxu0 0.0
    %1241 = vmatpush1.msra.mxu0 0.0
    %1242 = vmatprep.subr.mxu0 0.0
    %1243 = vmatpush1.msra.mxu0 0.0
    %1244 = vmatprep.subr.mxu0 0.0
    %1245 = vmatpush1.msra.mxu0 0.0
    %1246 = vmatprep.subr.mxu0 0.0
    %1247 = vmatpush1.msra.mxu0 0.0
    %1248 = vmatprep.subr.mxu0 0.0
    %1249 = vmatpush1.msra.mxu0 0.0
    %1250 = vmatprep.subr.mxu0 0.0
    %1251 = vmatpush1.msra.mxu0 0.0
    %1252 = vmatprep.subr.mxu0 0.0
    %1253 = vmatpush1.msra.mxu0 0.0
    %1254 = vmatprep.subr.mxu0 0.0
    %1255 = vmatpush1.msra.mxu0 0.0
    %1256 = vmatprep.subr.mxu0 0.0
    %1257 = vmatpush1.msra.mxu0 0.0
    %1258 = vmatprep.subr.mxu0 0.0
    %1259 = vmatpush1.msra.mxu0 0.0
    %1260 = vmatprep.subr.mxu0 0.0
    %1261 = vmatpush1.msra.mxu0 0.0
    %1262 = vmatprep.subr.mxu0 0.0
    %1263 = vmatpush1.msra.mxu0 0.0
    %1264 = vmatprep.subr.mxu0 0.0
    %1265 = vmatpush1.msra.mxu0 0.0
    %1266 = vmatprep.subr.mxu0 0.0
    %1267 = vmatpush1.msra.mxu0 0.0
    %1268 = vmatprep.subr.mxu0 0.0
    %1269 = vmatpush1.msra.mxu0 0.0
    %1270 = vmatprep.subr.mxu0 0.0
    %1271 = vmatpush1.msra.mxu0 0.0
    %1272 = vmatprep.mubr.f32.mxu0 0.0
    %1273 = vmatmul.mubr.f32.gmra.mrb[0].mxu0 %v1203
    %v1274 = vpop.f32.mrb[0].mxu0
    %v1275 = vadd.f32 0.0, %v1274
    %v1276 = vpop.f32.mrb[0].mxu0
    %1277 = vmatprep.mubr.f32.mxu0 0.0
    %1278 = vmatmul.mubr.f32.gmra.mrb[0].mxu0 %v1206
    %v1279 = vpop.f32.mrb[0].mxu0
    %v1280 = vadd.f32 0.0, %v1279
    %v1281 = vpop.f32.mrb[0].mxu0
    %1282 = vdwg.mxu0
    %v1283 = vadd.f32 %v995, %v1275
    %v1284 = vadd.f32 %v996, %v1280
    %1286 = vrot.lane.b32.xlu0 %v55, 32
    %v1287 = vpop.permute.xlu0 %1286
    %v1289 = vadd.f32 %v1283, %v1287
    %v1290 = vadd.f32 %v1284, %v1287
    %v1291 = vadd.f32 %v15, %v1289
    %v1292 = vadd.f32 %v16, %v1290
    %v1293 = vsel %vm19, %v1291, 0.0
    %1294 = vadd.xlane.f32.xlu0 %v1293
    %v1295 = vpop.xlane.xlu0 %1294
    %v1296 = vsel %vm19, %v1292, 0.0
    %1297 = vadd.xlane.f32.xlu0 %v1296
    %v1298 = vpop.xlane.xlu0 %1297
    %v1299 = vmul.f32 %v1295, %v26
    %v1300 = vmul.f32 %v1298, %v26
    %v1301 = vsub.f32 %v1291, %v1299
    %v1302 = vsub.f32 %v1292, %v1300
    %v1303 = vmul.f32 %v1301, %v1301
    %v1304 = vmul.f32 %v1302, %v1302
    %v1305 = vsel %vm19, %v1303, 0.0
    %1306 = vadd.xlane.f32.xlu0 %v1305
    %v1307 = vpop.xlane.xlu0 %1306
    %v1308 = vsel %vm19, %v1304, 0.0
    %1309 = vadd.xlane.f32.xlu0 %v1308
    %v1310 = vpop.xlane.xlu0 %1309
    %v1311 = vmul.f32 %v1307, 0.032258064
    %v1312 = vmul.f32 %v1310, 0.032258064
    %v1313 = vadd.f32 %v1311, 1e-06
    %v1314 = vadd.f32 %v1312, 1e-06
    %v1315 = vrsqrt.pop %v1313
    %v1316 = vrsqrt.pop %v1314
    %v1317 = vmul.f32 %v1301, %v1315
    %v1318 = vmul.f32 %v1302, %v1316
    %v1319 = vld [vmem:[%s2 + $0x20] sm:$0xff]
    %v1320 = vld [vmem:[%s2 + $0x28] sm:$0xff]
    %v1321 = vld [vmem:[%s2 + $0x30] sm:$0xff]
    %v1322 = vld [vmem:[%s2 + $0x38] sm:$0xff]
    %v1323 = vld [vmem:[%s2 + $0x68] sm:$0x1]
    %v1324 = vlaneseq
    %v1325 = vshrl.u32 %v1324, 7
    %v1326 = vsub.s32 0, %v1325
    %v1327 = vrot.slane %v1323, %v1326
    %v1329 = vsel %vm19, %v1317, 0
    %v1332 = vsel %vm19, %v1318, 0
    %1334 = vmatprep.subr.mxu0 0.0
    %1335 = vmatpush1.msra.mxu0 %v1319
    %1336 = vmatprep.subr.mxu0 0.0
    %1337 = vmatpush1.msra.mxu0 %v1320
    %1338 = vmatprep.subr.mxu0 0.0
    %1339 = vmatpush1.msra.mxu0 %v1321
    %1340 = vmatprep.subr.mxu0 0.0
    %1341 = vmatpush1.msra.mxu0 %v1322
    %1342 = vmatprep.subr.mxu0 0.0
    %1343 = vmatpush1.msra.mxu0 0.0
    %1344 = vmatprep.subr.mxu0 0.0
    %1345 = vmatpush1.msra.mxu0 0.0
    %1346 = vmatprep.subr.mxu0 0.0
    %1347 = vmatpush1.msra.mxu0 0.0
    %1348 = vmatprep.subr.mxu0 0.0
    %1349 = vmatpush1.msra.mxu0 0.0
    %1350 = vmatprep.subr.mxu0 0.0
    %1351 = vmatpush1.msra.mxu0 0.0
    %1352 = vmatprep.subr.mxu0 0.0
    %1353 = vmatpush1.msra.mxu0 0.0
    %1354 = vmatprep.subr.mxu0 0.0
    %1355 = vmatpush1.msra.mxu0 0.0
    %1356 = vmatprep.subr.mxu0 0.0
    %1357 = vmatpush1.msra.mxu0 0.0
    %1358 = vmatprep.subr.mxu0 0.0
    %1359 = vmatpush1.msra.mxu0 0.0
    %1360 = vmatprep.subr.mxu0 0.0
    %1361 = vmatpush1.msra.mxu0 0.0
    %1362 = vmatprep.subr.mxu0 0.0
    %1363 = vmatpush1.msra.mxu0 0.0
    %1364 = vmatprep.subr.mxu0 0.0
    %1365 = vmatpush1.msra.mxu0 0.0
    %1366 = vmatprep.subr.mxu0 0.0
    %1367 = vmatpush1.msra.mxu0 0.0
    %1368 = vmatprep.subr.mxu0 0.0
    %1369 = vmatpush1.msra.mxu0 0.0
    %1370 = vmatprep.subr.mxu0 0.0
    %1371 = vmatpush1.msra.mxu0 0.0
    %1372 = vmatprep.subr.mxu0 0.0
    %1373 = vmatpush1.msra.mxu0 0.0
    %1374 = vmatprep.subr.mxu0 0.0
    %1375 = vmatpush1.msra.mxu0 0.0
    %1376 = vmatprep.subr.mxu0 0.0
    %1377 = vmatpush1.msra.mxu0 0.0
    %1378 = vmatprep.subr.mxu0 0.0
    %1379 = vmatpush1.msra.mxu0 0.0
    %1380 = vmatprep.subr.mxu0 0.0
    %1381 = vmatpush1.msra.mxu0 0.0
    %1382 = vmatprep.subr.mxu0 0.0
    %1383 = vmatpush1.msra.mxu0 0.0
    %1384 = vmatprep.subr.mxu0 0.0
    %1385 = vmatpush1.msra.mxu0 0.0
    %1386 = vmatprep.subr.mxu0 0.0
    %1387 = vmatpush1.msra.mxu0 0.0
    %1388 = vmatprep.subr.mxu0 0.0
    %1389 = vmatpush1.msra.mxu0 0.0
    %1390 = vmatprep.subr.mxu0 0.0
    %1391 = vmatpush1.msra.mxu0 0.0
    %1392 = vmatprep.subr.mxu0 0.0
    %1393 = vmatpush1.msra.mxu0 0.0
    %1394 = vmatprep.subr.mxu0 0.0
    %1395 = vmatpush1.msra.mxu0 0.0
    %1396 = vmatprep.subr.mxu0 0.0
    %1397 = vmatpush1.msra.mxu0 0.0
    %1398 = vmatprep.mubr.f32.mxu0 0.0
    %1399 = vmatmul.mubr.f32.gmra.mrb[0].mxu0 %v1329
    %v1400 = vpop.f32.mrb[0].mxu0
    %v1401 = vadd.f32 %v1327, %v1400
    %v1402 = vpop.f32.mrb[0].mxu0
    %1403 = vmatprep.mubr.f32.mxu0 0.0
    %1404 = vmatmul.mubr.f32.gmra.mrb[0].mxu0 %v1332
    %v1405 = vpop.f32.mrb[0].mxu0
    %v1406 = vadd.f32 %v1327, %v1405
    %v1407 = vpop.f32.mrb[0].mxu0
    %1408 = vdwg.mxu0
    %v1409 = vmul.f32 %v1401, 0.5
    %v1410 = vmul.f32 %v1406, 0.5
    %v1411 = vmul.f32 %v1401, %v1401
    %v1412 = vmul.f32 %v1406, %v1406
    %v1413 = vmul.f32 %v1401, %v1411
    %v1414 = vmul.f32 %v1406, %v1412
    %v1415 = vmul.f32 %v1413, 0.044715
    %v1416 = vmul.f32 %v1414, 0.044715
    %v1417 = vadd.f32 %v1401, %v1415
    %v1418 = vadd.f32 %v1406, %v1416
    %v1419 = vmul.f32 %v1417, 0.7978846
    %v1420 = vmul.f32 %v1418, 0.7978846
    %v1421 = vtanh.pop %v1419
    %v1422 = vtanh.pop %v1420
    %v1423 = vadd.f32 %v1421, 1.0
    %v1424 = vadd.f32 %v1422, 1.0
    %v1425 = vmul.f32 %v1409, %v1423
    %v1426 = vmul.f32 %v1410, %v1424
    %v1427 = vld [vmem:[%s2 + $0x40] sm:$0xff]
    %v1428 = vld [vmem:[%s2 + $0x48] sm:$0xff]
    %v1429 = vld [vmem:[%s2 + $0x50] sm:$0xff]
    %v1430 = vld [vmem:[%s2 + $0x58] sm:$0xff]
    %v1431 = vld [vmem:[%s2 + $0x70] sm:$0x1]
    %v1432 = vlaneseq
    %v1433 = vshrl.u32 %v1432, 7
    %v1434 = vsub.s32 0, %v1433
    %v1435 = vrot.slane %v1431, %v1434
    %1436 = vmatprep.subr.mxu0 0.0
    %1437 = vmatpush1.xpose.msra.mxu0 %v1427
    %1438 = vmatprep.subr.mxu0 0.0
    %1439 = vmatpush1.xpose.msra.mxu0 %v1428
    %1440 = vmatprep.subr.mxu0 0.0
    %1441 = vmatpush1.xpose.msra.mxu0 %v1429
    %1442 = vmatprep.subr.mxu0 0.0
    %1443 = vmatpush1.xpose.msra.mxu0 %v1430
    %1444 = vmatprep.subr.mxu0 0.0
    %1445 = vmatpush1.xpose.msra.mxu0 0.0
    %1446 = vmatprep.subr.mxu0 0.0
    %1447 = vmatpush1.xpose.msra.mxu0 0.0
    %1448 = vmatprep.subr.mxu0 0.0
    %1449 = vmatpush1.xpose.msra.mxu0 0.0
    %1450 = vmatprep.subr.mxu0 0.0
    %1451 = vmatpush1.xpose.msra.mxu0 0.0
    %1452 = vmatprep.subr.mxu0 0.0
    %1453 = vmatpush1.xpose.msra.mxu0 0.0
    %1454 = vmatprep.subr.mxu0 0.0
    %1455 = vmatpush1.xpose.msra.mxu0 0.0
    %1456 = vmatprep.subr.mxu0 0.0
    %1457 = vmatpush1.xpose.msra.mxu0 0.0
    %1458 = vmatprep.subr.mxu0 0.0
    %1459 = vmatpush1.xpose.msra.mxu0 0.0
    %1460 = vmatprep.subr.mxu0 0.0
    %1461 = vmatpush1.xpose.msra.mxu0 0.0
    %1462 = vmatprep.subr.mxu0 0.0
    %1463 = vmatpush1.xpose.msra.mxu0 0.0
    %1464 = vmatprep.subr.mxu0 0.0
    %1465 = vmatpush1.xpose.msra.mxu0 0.0
    %1466 = vmatprep.subr.mxu0 0.0
    %1467 = vmatpush1.xpose.msra.mxu0 0.0
    %1468 = vmatprep.subr.mxu0 0.0
    %1469 = vmatpush1.xpose.msra.mxu0 0.0
    %1470 = vmatprep.subr.mxu0 0.0
    %1471 = vmatpush1.xpose.msra.mxu0 0.0
    %1472 = vmatprep.subr.mxu0 0.0
    %1473 = vmatpush1.xpose.msra.mxu0 0.0
    %1474 = vmatprep.subr.mxu0 0.0
    %1475 = vmatpush1.xpose.msra.mxu0 0.0
    %1476 = vmatprep.subr.mxu0 0.0
    %1477 = vmatpush1.xpose.msra.mxu0 0.0
    %1478 = vmatprep.subr.mxu0 0.0
    %1479 = vmatpush1.xpose.msra.mxu0 0.0
    %1480 = vmatprep.subr.mxu0 0.0
    %1481 = vmatpush1.xpose.msra.mxu0 0.0
    %1482 = vmatprep.subr.mxu0 0.0
    %1483 = vmatpush1.xpose.msra.mxu0 0.0
    %1484 = vmatprep.subr.mxu0 0.0
    %1485 = vmatpush1.xpose.msra.mxu0 0.0
    %1486 = vmatprep.subr.mxu0 0.0
    %1487 = vmatpush1.xpose.msra.mxu0 0.0
    %1488 = vmatprep.subr.mxu0 0.0
    %1489 = vmatpush1.xpose.msra.mxu0 0.0
    %1490 = vmatprep.subr.mxu0 0.0
    %1491 = vmatpush1.xpose.msra.mxu0 0.0
    %1492 = vmatprep.subr.mxu0 0.0
    %1493 = vmatpush1.xpose.msra.mxu0 0.0
    %1494 = vmatprep.subr.mxu0 0.0
    %1495 = vmatpush1.xpose.msra.mxu0 0.0
    %1496 = vmatprep.subr.mxu0 0.0
    %1497 = vmatpush1.xpose.msra.mxu0 0.0
    %1498 = vmatprep.subr.mxu0 0.0
    %1499 = vmatpush1.xpose.msra.mxu0 0.0
    %1500 = vmatprep.mubr.f32.mxu0 0.0
    %1501 = vmatmul.mubr.f32.gmra.mrb[0].mxu0 %v1425
    %v1502 = vpop.f32.mrb[0].mxu0
    %v1503 = vadd.f32 %v1435, %v1502
    %v1504 = vpop.f32.mrb[0].mxu0
    %1505 = vmatprep.mubr.f32.mxu0 0.0
    %1506 = vmatmul.mubr.f32.gmra.mrb[0].mxu0 %v1426
    %v1507 = vpop.f32.mrb[0].mxu0
    %v1508 = vadd.f32 %v1435, %v1507
    %v1509 = vpop.f32.mrb[0].mxu0
    %1510 = vdwg.mxu0
    %v1511 = vadd.f32 %v1291, %v1503
    %v1512 = vadd.f32 %v1292, %v1508
    %1513 = vst.msk [vmem:[#allocation2] sm:$0xff] %vm19, %v1511
    %1514 = vst.msk [vmem:[#allocation2 + $0x8] sm:$0xff] %vm19, %v1512
    // Predicated region
    $region14: #{transformer_block.1} parent=1 // pred_check
      _
    $region15: #{transformer_block.1} parent=1 // pred_check_branch
      %1516 = sbr.rel (0) target = $region17
    $region16: #{transformer_block.1} parent=1 // pred_region
      %s1518 = ssub.s32 256, 256
      %1519 = vsyncadd [#allocation3], %s1518
      %s1520 = sshll.u32 [#allocation2], 4
      %s1521 = int_to_ptr.vmem [resolvable:$true] %s1520
      %1526 = dma.vmem_to_hbm [thread:$0]  %s1521, 256, %s3, [#allocation3], 128, 128, 8
    $region17: #{transformer_block.1} parent=1 // pred_fallthru
      _
    // Predicated region
    $region18: #{transformer_block.1} parent=1 // pred_check
      _
    $region19: #{transformer_block.1} parent=1 // pred_check_branch
      %1528 = sbr.rel (0) target = $region21
    $region20: #{transformer_block.1} parent=1 // pred_region
      %1529 = dma.done [#allocation3], 256
    $region21: #{transformer_block.1} parent=1 // pred_fallthru
      _
    %1530 = vsyncpa [#allocation3], 1

</llo_original>
